<compile_context>
chip_gen: v5e
topology: v5e:2x2
jax: 0.10.0
libtpu: 0.0.40
codegen_flags: <defaults>
</compile_context>

<pallas_src>
import functools

import jax
import jax.numpy as jnp
from jax import lax
from jax.experimental import pallas as pl
from jax.experimental.pallas import tpu as pltpu


def _round_up(x, m):
    return ((x + m - 1) // m) * m


def _vmem_limit_bytes():
    """Device-aware VMEM budget (v7x has 64 MiB/TC vs 128 MiB on v5e/v6e)."""
    try:
        cap = int(pltpu.get_tpu_info().vmem_capacity_bytes)
    except Exception:
        cap = 64 * 1024 * 1024  # conservative fallback (safe on every generation)
    return max(32 * 1024 * 1024, min(int(cap * 0.8), 100 * 1024 * 1024))


def _silu(y):
    # f32 in / f32 out.  exp and the approximate reciprocal both run on the EUP
    # slot, keeping the sigmoid divide off the VALU.
    return y * pl.reciprocal(1.0 + jnp.exp(-y), approx=True)


# ----------------------------------------------------------------------------
# Kernel 1: fused cv1 + cv2 (two 1x1 conv + BN + SiLU sharing one input read)
# ----------------------------------------------------------------------------
def _cv12_kernel(x_ref, m_ref, w1_ref, s1_ref, b1_ref, w2_ref, s2_ref, b2_ref,
                 y1_ref, y2_ref):
    x = x_ref[...]
    m = m_ref[...]
    a = jnp.dot(x, w1_ref[...], preferred_element_type=jnp.float32)
    a = _silu(a * s1_ref[...] + b1_ref[...]) * m          # zero at pad rows
    y1_ref[...] = a.astype(y1_ref.dtype)
    b = jnp.dot(x, w2_ref[...], preferred_element_type=jnp.float32)
    b = _silu(b * s2_ref[...] + b2_ref[...])
    y2_ref[...] = b.astype(y2_ref.dtype)


# ----------------------------------------------------------------------------
# Kernel 2: fused Bottleneck (1x1 -> 3x3 (+res)), optionally with cv3 fused in.
# ----------------------------------------------------------------------------
def _bottleneck_kernel(*refs, add, fuse_cv3, tm, halo, wp, cmid, rbuf, nrows,
                       ninner, stack):
    if fuse_cv3:
        (h_hbm, m_hbm, mblk_ref, w1_ref, s1_ref, b1_ref, w9_ref, s2_ref, b2_ref,
         y2_ref, wa_ref, wb_ref, s3_ref, b3_ref,
         o_ref, dbuf, mbuf, tbuf, sem_h, sem_m) = refs
    else:
        (h_hbm, m_hbm, mblk_ref, w1_ref, s1_ref, b1_ref, w9_ref, s2_ref, b2_ref,
         o_ref, dbuf, mbuf, tbuf, sem_h, sem_m) = refs

    outer = pl.program_id(0)
    it = pl.program_id(1)
    blk = outer * ninner + it
    slot = lax.rem(it, 2)

    def copies(block_idx, slot_idx):
        # Identical descriptors are used for start() and wait().  The start row is
        # clamped only for the all-padding edge blocks (their output is forced to
        # zero by the exact per-tile mask below, so the shifted taps are harmless).
        start = block_idx * tm - halo
        start = jnp.minimum(jnp.maximum(start, 0), nrows - rbuf)
        start = pl.multiple_of(start, 8)
        return (
            pltpu.make_async_copy(h_hbm.at[pl.ds(start, rbuf)], dbuf.at[slot_idx],
                                  sem_h.at[slot_idx]),
            pltpu.make_async_copy(m_hbm.at[pl.ds(start, rbuf)], mbuf.at[slot_idx],
                                  sem_m.at[slot_idx]),
        )

    @pl.when(it == 0)
    def _():                                  # prime the per-core pipeline
        for c in copies(blk, slot):
            c.start()

    @pl.when(it + 1 < ninner)
    def _():                                  # prefetch the next halo window
        for c in copies(blk + 1, 1 - slot):
            c.start()

    for c in copies(blk, slot):
        c.wait()

    hd = dbuf[slot]                           # (rbuf, cmid) bf16 activations
    hm = mbuf[slot]                           # (rbuf, 1)    f32 interior mask

    # Bottleneck cv1 (1x1 conv + BN + SiLU), forced to zero at spatial-padding
    # rows so the 3x3 conv below sees proper zero padding.  Staged in VMEM.
    t = jnp.dot(hd, w1_ref[...], preferred_element_type=jnp.float32)
    t = _silu(t * s1_ref[...] + b1_ref[...]) * hm
    tbuf[...] = t

    def tap(k):
        ky, kx = divmod(k, 3)
        off = halo + (ky - 1) * wp + (kx - 1)
        return tbuf[pl.ds(off, tm), :]

    # 3x3 conv as accumulated bf16 MXU matmuls over static-offset windows of t.
    wdt = w9_ref.dtype
    acc = None
    if stack:
        # Stack the 3 kx taps along K (K = 3*cmid >= 384) to fill the 256-wide MXU.
        for ky in range(3):
            x3 = jnp.concatenate([tap(ky * 3 + 0), tap(ky * 3 + 1), tap(ky * 3 + 2)],
                                 axis=1).astype(wdt)
            d = jnp.dot(x3, w9_ref[ky], preferred_element_type=jnp.float32)
            acc = d if acc is None else acc + d
    else:
        for k in range(9):
            d = jnp.dot(tap(k).astype(wdt), w9_ref[k],
                        preferred_element_type=jnp.float32)
            acc = d if acc is None else acc + d

    y = _silu(acc * s2_ref[...] + b2_ref[...])
    if add:
        y = y + hd[halo:halo + tm, :].astype(jnp.float32)   # residual, same tile
    y = y * mblk_ref[...]                     # exact mask for this output tile

    if fuse_cv3:
        # concat + cv3:  out = silu((h @ Wa + y2 @ Wb) * s + b); concat never built.
        z = jnp.dot(y.astype(wa_ref.dtype), wa_ref[...],
                    preferred_element_type=jnp.float32)
        z = z + jnp.dot(y2_ref[...], wb_ref[...],
                        preferred_element_type=jnp.float32)
        z = _silu(z * s3_ref[...] + b3_ref[...])
        o_ref[...] = z.astype(o_ref.dtype)
    else:
        o_ref[...] = y.astype(o_ref.dtype)


# ----------------------------------------------------------------------------
# Kernel 3: standalone concat + cv3 (only used when n == 0)
# ----------------------------------------------------------------------------
def _cv3_kernel(h_ref, y2_ref, wa_ref, wb_ref, s_ref, b_ref, o_ref):
    z = jnp.dot(h_ref[...], wa_ref[...], preferred_element_type=jnp.float32)
    z = z + jnp.dot(y2_ref[...], wb_ref[...], preferred_element_type=jnp.float32)
    o_ref[...] = _silu(z * s_ref[...] + b_ref[...]).astype(o_ref.dtype)


# ----------------------------------------------------------------------------
# Pallas wrappers
# ----------------------------------------------------------------------------
def _fused_cv12(xr, maskr, p1, p2, tm, vlim, cdt):
    R, c1 = xr.shape
    cmid = p1["w"].shape[1]
    w1 = p1["w"].astype(cdt)
    w2 = p2["w"].astype(cdt)
    return pl.pallas_call(
        _cv12_kernel,
        out_shape=(jax.ShapeDtypeStruct((R, cmid), cdt),
                   jax.ShapeDtypeStruct((R, cmid), cdt)),
        grid=(R // tm,),
        in_specs=[pl.BlockSpec((tm, c1), lambda i: (i, 0)),
                  pl.BlockSpec((tm, 1), lambda i: (i, 0)),
                  pl.BlockSpec((c1, cmid), lambda i: (0, 0)),
                  pl.BlockSpec((1, cmid), lambda i: (0, 0)),
                  pl.BlockSpec((1, cmid), lambda i: (0, 0)),
                  pl.BlockSpec((c1, cmid), lambda i: (0, 0)),
                  pl.BlockSpec((1, cmid), lambda i: (0, 0)),
                  pl.BlockSpec((1, cmid), lambda i: (0, 0))],
        out_specs=(pl.BlockSpec((tm, cmid), lambda i: (i, 0)),
                   pl.BlockSpec((tm, cmid), lambda i: (i, 0))),
        compiler_params=pltpu.CompilerParams(
            dimension_semantics=("parallel",), vmem_limit_bytes=vlim),
    )(xr, maskr, w1, p1["scale"], p1["bias"], w2, p2["scale"], p2["bias"])


def _fused_bottleneck(h, maskr, bp, add, wp, tm, halo, nouter, cv3, vlim):
    R, cmid = h.shape
    rbuf = tm + 2 * halo
    nblk = R // tm
    ninner = nblk // nouter
    cdt = h.dtype
    stack = (cmid % 128 == 0)

    w1 = bp["cv1"]["w"].astype(cdt)
    if stack:
        w9 = bp["cv2"]["w"].reshape(3, 3 * cmid, cmid).astype(cdt)
    else:
        w9 = bp["cv2"]["w"].reshape(9, cmid, cmid).astype(cdt)

    const2 = lambda o, i: (0, 0)
    const3 = lambda o, i: (0, 0, 0)
    blk2 = lambda o, i: (o * ninner + i, 0)

    in_specs = [pl.BlockSpec(memory_space=pl.ANY),              # h  (halo DMA)
                pl.BlockSpec(memory_space=pl.ANY),              # mask (halo DMA)
                pl.BlockSpec((tm, 1), blk2),                    # mask, exact tile
                pl.BlockSpec((cmid, cmid), const2),             # w1
                pl.BlockSpec((1, cmid), const2),                # s1
                pl.BlockSpec((1, cmid), const2),                # b1
                pl.BlockSpec(w9.shape, const3),                 # w9
                pl.BlockSpec((1, cmid), const2),                # s2
                pl.BlockSpec((1, cmid), const2)]                # b2
    args = [h, maskr, maskr, w1, bp["cv1"]["scale"], bp["cv1"]["bias"],
            w9, bp["cv2"]["scale"], bp["cv2"]["bias"]]

    if cv3 is not None:
        p3, y2 = cv3
        cout = p3["w"].shape[1]
        wa = p3["w"][:cmid].astype(cdt)
        wb = p3["w"][cmid:].astype(cdt)
        in_specs += [pl.BlockSpec((tm, cmid), blk2),            # y2
                     pl.BlockSpec((cmid, cout), const2),        # cv3 w (top half)
                     pl.BlockSpec((cmid, cout), const2),        # cv3 w (bottom half)
                     pl.BlockSpec((1, cout), const2),           # s3
                     pl.BlockSpec((1, cout), const2)]           # b3
        args += [y2, wa, wb, p3["scale"], p3["bias"]]
        out_dtype = jnp.float32
    else:
        cout = cmid
        out_dtype = cdt

    kernel = functools.partial(
        _bottleneck_kernel, add=add, fuse_cv3=(cv3 is not None), tm=tm, halo=halo,
        wp=wp, cmid=cmid, rbuf=rbuf, nrows=R, ninner=ninner, stack=stack)

    return pl.pallas_call(
        kernel,
        out_shape=jax.ShapeDtypeStruct((R, cout), out_dtype),
        grid=(nouter, ninner),
        in_specs=in_specs,
        out_specs=pl.BlockSpec((tm, cout), blk2),
        scratch_shapes=[pltpu.VMEM((2, rbuf, cmid), cdt),        # halo dbl buffer
                        pltpu.VMEM((2, rbuf, 1), maskr.dtype),   # halo mask buffer
                        pltpu.VMEM((rbuf, cmid), jnp.float32),   # staged t
                        pltpu.SemaphoreType.DMA((2,)),
                        pltpu.SemaphoreType.DMA((2,))],
        # Outer axis "parallel" so v7x can split the row range across both
        # TensorCores; inner axis "arbitrary" because the manual double-buffered
        # halo DMA assumes sequential execution (re-primed at inner step 0).
        compiler_params=pltpu.CompilerParams(
            dimension_semantics=("parallel", "arbitrary"),
            vmem_limit_bytes=vlim),
    )(*args)


def _fused_concat_cv3(y1, y2, p3, tm, n_real, vlim):
    R, cmid = y1.shape
    c2 = p3["w"].shape[1]
    cdt = y1.dtype
    wa = p3["w"][:cmid].astype(cdt)
    wb = p3["w"][cmid:].astype(cdt)
    return pl.pallas_call(
        _cv3_kernel,
        out_shape=jax.ShapeDtypeStruct((n_real * tm, c2), jnp.float32),
        grid=(n_real,),
        in_specs=[pl.BlockSpec((tm, cmid), lambda i: (i + 1, 0)),
                  pl.BlockSpec((tm, cmid), lambda i: (i + 1, 0)),
                  pl.BlockSpec((cmid, c2), lambda i: (0, 0)),
                  pl.BlockSpec((cmid, c2), lambda i: (0, 0)),
                  pl.BlockSpec((1, c2), lambda i: (0, 0)),
                  pl.BlockSpec((1, c2), lambda i: (0, 0))],
        out_specs=pl.BlockSpec((tm, c2), lambda i: (i, 0)),
        compiler_params=pltpu.CompilerParams(
            dimension_semantics=("parallel",), vmem_limit_bytes=vlim),
    )(y1, y2, wa, wb, p3["scale"], p3["bias"])


# ----------------------------------------------------------------------------
# Tile-size selection: row-pitch aware and VMEM aware.
# ----------------------------------------------------------------------------
def _pick_tm(wp, cmid, halo, vmem_limit):
    tm = min(max(512, 16 * halo), 2048)        # bound halo recompute overhead
    tm = max(_round_up(tm, 16), halo)

    def footprint(t):
        rb = t + 2 * halo
        b = 2 * rb * cmid * 2                  # halo double buffer (bf16)
        b += 2 * rb * 128 * 4                  # halo mask buffer (lane padded)
        b += rb * cmid * 4                     # staged t (f32)
        b += 2 * t * max(cmid, 128) * 4        # double-buffered output tile
        b += 2 * t * max(cmid, 128) * 2        # y2 tile (fused cv3)
        b += 2 * t * 128 * 4                   # blocked mask tile
        b += 2 * 12 * cmid * cmid * 2          # w1 + w9 + cv3 halves (dbl buffered)
        return b

    budget = int(vmem_limit * 0.6)
    floor = max(halo, 256)
    while footprint(tm) > budget and tm - 256 >= floor:
        tm -= 256
    return tm


# ----------------------------------------------------------------------------
# Parameter init (deterministic, synthetic) and C3 forward
# ----------------------------------------------------------------------------
def _fold_bn(gamma, beta, mean, var, eps=1e-5):
    scale = gamma / jnp.sqrt(var + eps)
    bias = beta - mean * scale
    return scale.reshape(1, -1), bias.reshape(1, -1)


def init_conv_params(key, cin, cout, k):
    kw, kg, kb, km, kv = jax.random.split(key, 5)
    fan_in = cin * k * k
    w = jax.random.normal(kw, (k, k, cin, cout), jnp.float32) / jnp.sqrt(fan_in)
    gamma = 1.0 + 0.1 * jax.random.normal(kg, (cout,), jnp.float32)
    beta = 0.1 * jax.random.normal(kb, (cout,), jnp.float32)
    mean = 0.1 * jax.random.normal(km, (cout,), jnp.float32)
    var = 1.0 + 0.1 * jax.random.uniform(kv, (cout,), jnp.float32)
    scale, bias = _fold_bn(gamma, beta, mean, var)
    if k == 1:
        w = w.reshape(cin, cout)
    return {"w": w, "scale": scale, "bias": bias}


def c3_init(key, c1, c2, n=1, shortcut=True, e=0.5):
    c_ = int(c2 * e)
    keys = jax.random.split(key, 3 + 2 * n)
    return {
        "cv1": init_conv_params(keys[0], c1, c_, 1),
        "cv2": init_conv_params(keys[1], c1, c_, 1),
        "cv3": init_conv_params(keys[2], 2 * c_, c2, 1),
        "m": [{"cv1": init_conv_params(keys[3 + 2 * i], c_, c_, 1),
               "cv2": init_conv_params(keys[4 + 2 * i], c_, c_, 3)}
              for i in range(n)],
        "shortcut": shortcut,
        "c_": c_,
    }


def c3_forward(params, x_nchw, tm=None, compute_dtype=jnp.bfloat16):
    """C3.forward. Accepts NCHW (PyTorch layout), returns NCHW float32."""
    x = jnp.transpose(x_nchw, (0, 2, 3, 1)).astype(compute_dtype)   # -> NHWC
    N, H, W, C1 = x.shape
    Hp, Wp = H + 2, W + 2
    Mp = N * Hp * Wp
    cmid = params["cv1"]["w"].shape[-1]
    C2 = params["cv3"]["w"].shape[1]
    vlim = _vmem_limit_bytes()

    halo = _round_up(Wp + 1, 16)               # 16-aligned so bf16 windows align
    if tm is None:
        tm = _pick_tm(Wp, cmid, halo, vlim)
    tm = max(_round_up(tm, 16), halo)

    # Unified halo row layout shared by every activation buffer.
    Mp_t = _round_up(Mp, tm)
    G = Mp_t // tm
    nblk = G + 2                               # front pad block + real + tail pad
    nouter = 2 if nblk >= 8 else 1             # v7x: split rows across 2 TCs
    nblk = _round_up(nblk, nouter)
    R = nblk * tm

    xr = jnp.pad(x, ((0, 0), (1, 1), (1, 1), (0, 0))).reshape(Mp, C1)
    xr = jnp.pad(xr, ((tm, R - tm - Mp), (0, 0)))
    maskr = jnp.pad(jnp.ones((N, H, W, 1), jnp.float32),
                    ((0, 0), (1, 1), (1, 1), (0, 0))).reshape(Mp, 1)
    maskr = jnp.pad(maskr, ((tm, R - tm - Mp), (0, 0)))

    y1, y2 = _fused_cv12(xr, maskr, params["cv1"], params["cv2"], tm, vlim,
                         compute_dtype)

    nb = len(params["m"])
    h = y1
    for li, bp in enumerate(params["m"]):
        cv3 = (params["cv3"], y2) if li == nb - 1 else None   # fuse cv3 into last
        h = _fused_bottleneck(h, maskr, bp, params["shortcut"], Wp, tm, halo,
                              nouter, cv3, vlim)
    if nb == 0:
        out = _fused_concat_cv3(y1, y2, params["cv3"], tm, G, vlim)[:Mp]
    else:
        out = h[tm:tm + Mp]

    out = out.reshape(N, Hp, Wp, C2)[:, 1:H + 1, 1:W + 1, :]
    return jnp.transpose(out, (0, 3, 1, 2)).astype(jnp.float32)     # -> NCHW


# ----------------------------------------------------------------------------
# Pure-JAX reference (for correctness check only)
# ----------------------------------------------------------------------------
def _conv_bn_silu_ref(x_nhwc, w, scale, bias, k):
    w4 = w.reshape(1, 1, w.shape[0], w.shape[1]) if k == 1 else w
    y = lax.conv_general_dilated(x_nhwc, w4, window_strides=(1, 1),
                                 padding="SAME",
                                 dimension_numbers=("NHWC", "HWIO", "NHWC"))
    y = y * scale.reshape(1, 1, 1, -1) + bias.reshape(1, 1, 1, -1)
    return y * jax.nn.sigmoid(y)


def c3_ref(params, x_nchw):
    x = jnp.transpose(x_nchw, (0, 2, 3, 1))
    cv = lambda z, p, k: _conv_bn_silu_ref(z, p["w"], p["scale"], p["bias"], k)
    y1 = cv(x, params["cv1"], 1)
    y2 = cv(x, params["cv2"], 1)
    h = y1
    for bp in params["m"]:
        t = cv(cv(h, bp["cv1"], 1), bp["cv2"], 3)
        h = h + t if params["shortcut"] else t
    out = cv(jnp.concatenate([h, y2], axis=-1), params["cv3"], 1)
    return jnp.transpose(out, (0, 3, 1, 2))


# ----------------------------------------------------------------------------
if __name__ == "__main__":
    key = jax.random.PRNGKey(0)
    kx, kp1, kp2 = jax.random.split(key, 3)

    N, C1, H, W = 2, 4, 16, 16
    C2 = 8
    x = jax.random.normal(kx, (N, C1, H, W), jnp.float32)

    configs = [
        ("n=1", c3_init(kp1, C1, C2, n=1, shortcut=True, e=0.5)),
        ("n=2", c3_init(kp2, C1, C2, n=2, shortcut=True, e=0.5)),
    ]
    for name, params in configs:
        out = jax.block_until_ready(c3_forward(params, x))
        ref = jax.block_until_ready(c3_ref(params, x))
        assert out.shape == (N, C2, H, W), (name, out.shape)
        max_err = float(jnp.max(jnp.abs(out - ref)))
        if max_err > 8e-2:   # bf16 activations/weights + approx-reciprocal SiLU
            raise AssertionError(f"Pallas C3 mismatch vs reference ({name}): {max_err}")

    print("KERNEL_OK")
</pallas_src>

<mosaic_0001>
module attributes {stable_mosaic.version = 11 : i64} {
  func.func @_cv12_kernel(%arg0: i32, %arg1: memref<512x4xbf16, #tpu.memory_space<vmem>>, %arg2: memref<512x1xf32, #tpu.memory_space<vmem>>, %arg3: memref<4x4xbf16, #tpu.memory_space<vmem>>, %arg4: memref<1x4xf32, #tpu.memory_space<vmem>>, %arg5: memref<1x4xf32, #tpu.memory_space<vmem>>, %arg6: memref<4x4xbf16, #tpu.memory_space<vmem>>, %arg7: memref<1x4xf32, #tpu.memory_space<vmem>>, %arg8: memref<1x4xf32, #tpu.memory_space<vmem>>, %arg9: memref<512x4xbf16, #tpu.memory_space<vmem>>, %arg10: memref<512x4xbf16, #tpu.memory_space<vmem>>) attributes {dimension_semantics = [#tpu.dimension_semantics<parallel>], iteration_bounds = array<i64: 4>, scalar_prefetch = 0 : i64, scratch_operands = 0 : i64, tpu.core_type = #tpu.core_type<tc>, window_params = [{transform_indices = @transform_0, window_bounds = array<i64: 512, 4>}, {transform_indices = @transform_1, window_bounds = array<i64: 512, 1>}, {pipeline_mode = #tpu.pipeline_mode<synchronous>, transform_indices = @transform_2, window_bounds = array<i64: 4, 4>}, {pipeline_mode = #tpu.pipeline_mode<synchronous>, transform_indices = @transform_3, window_bounds = array<i64: 1, 4>}, {pipeline_mode = #tpu.pipeline_mode<synchronous>, transform_indices = @transform_4, window_bounds = array<i64: 1, 4>}, {pipeline_mode = #tpu.pipeline_mode<synchronous>, transform_indices = @transform_5, window_bounds = array<i64: 4, 4>}, {pipeline_mode = #tpu.pipeline_mode<synchronous>, transform_indices = @transform_6, window_bounds = array<i64: 1, 4>}, {pipeline_mode = #tpu.pipeline_mode<synchronous>, transform_indices = @transform_7, window_bounds = array<i64: 1, 4>}, {transform_indices = @transform_8, window_bounds = array<i64: 512, 4>}, {transform_indices = @transform_9, window_bounds = array<i64: 512, 4>}]} {
    %c0 = arith.constant 0 : index
    %c0_0 = arith.constant 0 : index
    %0 = vector.load %arg1[%c0, %c0_0] : memref<512x4xbf16, #tpu.memory_space<vmem>>, vector<512x4xbf16>
    %c0_1 = arith.constant 0 : index
    %c0_2 = arith.constant 0 : index
    %1 = vector.load %arg2[%c0_1, %c0_2] : memref<512x1xf32, #tpu.memory_space<vmem>>, vector<512x1xf32>
    %c0_3 = arith.constant 0 : index
    %c0_4 = arith.constant 0 : index
    %2 = vector.load %arg3[%c0_3, %c0_4] : memref<4x4xbf16, #tpu.memory_space<vmem>>, vector<4x4xbf16>
    %cst = arith.constant dense<0.000000e+00> : vector<512x4xf32>
    %3 = tpu.matmul %0, %2, %cst {dimension_numbers = #tpu.dot_dimension_numbers<[1], [0], [0], [1], [0, 0, 1, 1], [], []>} : vector<512x4xbf16>, vector<4x4xbf16>, vector<512x4xf32> -> vector<512x4xf32>
    %c0_5 = arith.constant 0 : index
    %c0_6 = arith.constant 0 : index
    %4 = vector.load %arg4[%c0_5, %c0_6] : memref<1x4xf32, #tpu.memory_space<vmem>>, vector<1x4xf32>
    %5 = vector.broadcast %4 : vector<1x4xf32> to vector<512x4xf32>
    %6 = arith.mulf %3, %5 : vector<512x4xf32>
    %c0_7 = arith.constant 0 : index
    %c0_8 = arith.constant 0 : index
    %7 = vector.load %arg5[%c0_7, %c0_8] : memref<1x4xf32, #tpu.memory_space<vmem>>, vector<1x4xf32>
    %8 = vector.broadcast %7 : vector<1x4xf32> to vector<512x4xf32>
    %9 = arith.addf %6, %8 : vector<512x4xf32>
    %cst_9 = arith.constant 0.000000e+00 : f32
    %10 = vector.broadcast %cst_9 : f32 to vector<512x4xf32>
    %11 = arith.subf %10, %9 : vector<512x4xf32>
    %12 = math.exp %11 : vector<512x4xf32>
    %cst_10 = arith.constant 1.000000e+00 : f32
    %13 = vector.broadcast %cst_10 : f32 to vector<512x4xf32>
    %14 = arith.addf %13, %12 : vector<512x4xf32>
    %15 = tpu.reciprocal %14 {approx = true} : vector<512x4xf32> -> vector<512x4xf32>
    %16 = arith.mulf %9, %15 : vector<512x4xf32>
    %17 = vector.broadcast %1 : vector<512x1xf32> to vector<512x4xf32>
    %18 = arith.mulf %16, %17 : vector<512x4xf32>
    %19 = arith.truncf %18 : vector<512x4xf32> to vector<512x4xbf16>
    %c0_11 = arith.constant 0 : index
    %c0_12 = arith.constant 0 : index
    %20 = vector.load %arg9[%c0_11, %c0_12] : memref<512x4xbf16, #tpu.memory_space<vmem>>, vector<512x4xbf16>
    tpu.vector_store %arg9[%c0_11, %c0_12], %19 {strides = array<i32>} : memref<512x4xbf16, #tpu.memory_space<vmem>>, vector<512x4xbf16>,
    %c0_13 = arith.constant 0 : index
    %c0_14 = arith.constant 0 : index
    %21 = vector.load %arg6[%c0_13, %c0_14] : memref<4x4xbf16, #tpu.memory_space<vmem>>, vector<4x4xbf16>
    %cst_15 = arith.constant dense<0.000000e+00> : vector<512x4xf32>
    %22 = tpu.matmul %0, %21, %cst_15 {dimension_numbers = #tpu.dot_dimension_numbers<[1], [0], [0], [1], [0, 0, 1, 1], [], []>} : vector<512x4xbf16>, vector<4x4xbf16>, vector<512x4xf32> -> vector<512x4xf32>
    %c0_16 = arith.constant 0 : index
    %c0_17 = arith.constant 0 : index
    %23 = vector.load %arg7[%c0_16, %c0_17] : memref<1x4xf32, #tpu.memory_space<vmem>>, vector<1x4xf32>
    %24 = vector.broadcast %23 : vector<1x4xf32> to vector<512x4xf32>
    %25 = arith.mulf %22, %24 : vector<512x4xf32>
    %c0_18 = arith.constant 0 : index
    %c0_19 = arith.constant 0 : index
    %26 = vector.load %arg8[%c0_18, %c0_19] : memref<1x4xf32, #tpu.memory_space<vmem>>, vector<1x4xf32>
    %27 = vector.broadcast %26 : vector<1x4xf32> to vector<512x4xf32>
    %28 = arith.addf %25, %27 : vector<512x4xf32>
    %cst_20 = arith.constant 0.000000e+00 : f32
    %29 = vector.broadcast %cst_20 : f32 to vector<512x4xf32>
    %30 = arith.subf %29, %28 : vector<512x4xf32>
    %31 = math.exp %30 : vector<512x4xf32>
    %cst_21 = arith.constant 1.000000e+00 : f32
    %32 = vector.broadcast %cst_21 : f32 to vector<512x4xf32>
    %33 = arith.addf %32, %31 : vector<512x4xf32>
    %34 = tpu.reciprocal %33 {approx = true} : vector<512x4xf32> -> vector<512x4xf32>
    %35 = arith.mulf %28, %34 : vector<512x4xf32>
    %36 = arith.truncf %35 : vector<512x4xf32> to vector<512x4xbf16>
    %c0_22 = arith.constant 0 : index
    %c0_23 = arith.constant 0 : index
    %37 = vector.load %arg10[%c0_22, %c0_23] : memref<512x4xbf16, #tpu.memory_space<vmem>>, vector<512x4xbf16>
    tpu.vector_store %arg10[%c0_22, %c0_23], %36 {strides = array<i32>} : memref<512x4xbf16, #tpu.memory_space<vmem>>, vector<512x4xbf16>,
    return
  }
  func.func @transform_0(%arg0: i32) -> (i32, i32) {
    %c0_i32 = arith.constant 0 : i32
    %c0_i32_0 = arith.constant 0 : i32
    return %arg0, %c0_i32 : i32, i32
  }
  func.func @transform_1(%arg0: i32) -> (i32, i32) {
    %c0_i32 = arith.constant 0 : i32
    %c0_i32_0 = arith.constant 0 : i32
    return %arg0, %c0_i32 : i32, i32
  }
  func.func @transform_2(%arg0: i32) -> (i32, i32) {
    %c0_i32 = arith.constant 0 : i32
    %c0_i32_0 = arith.constant 0 : i32
    %c0_i32_1 = arith.constant 0 : i32
    return %c0_i32, %c0_i32_0 : i32, i32
  }
  func.func @transform_3(%arg0: i32) -> (i32, i32) {
    %c0_i32 = arith.constant 0 : i32
    %c0_i32_0 = arith.constant 0 : i32
    %c0_i32_1 = arith.constant 0 : i32
    return %c0_i32, %c0_i32_0 : i32, i32
  }
  func.func @transform_4(%arg0: i32) -> (i32, i32) {
    %c0_i32 = arith.constant 0 : i32
    %c0_i32_0 = arith.constant 0 : i32
    %c0_i32_1 = arith.constant 0 : i32
    return %c0_i32, %c0_i32_0 : i32, i32
  }
  func.func @transform_5(%arg0: i32) -> (i32, i32) {
    %c0_i32 = arith.constant 0 : i32
    %c0_i32_0 = arith.constant 0 : i32
    %c0_i32_1 = arith.constant 0 : i32
    return %c0_i32, %c0_i32_0 : i32, i32
  }
  func.func @transform_6(%arg0: i32) -> (i32, i32) {
    %c0_i32 = arith.constant 0 : i32
    %c0_i32_0 = arith.constant 0 : i32
    %c0_i32_1 = arith.constant 0 : i32
    return %c0_i32, %c0_i32_0 : i32, i32
  }
  func.func @transform_7(%arg0: i32) -> (i32, i32) {
    %c0_i32 = arith.constant 0 : i32
    %c0_i32_0 = arith.constant 0 : i32
    %c0_i32_1 = arith.constant 0 : i32
    return %c0_i32, %c0_i32_0 : i32, i32
  }
  func.func @transform_8(%arg0: i32) -> (i32, i32) {
    %c0_i32 = arith.constant 0 : i32
    %c0_i32_0 = arith.constant 0 : i32
    return %arg0, %c0_i32 : i32, i32
  }
  func.func @transform_9(%arg0: i32) -> (i32, i32) {
    %c0_i32 = arith.constant 0 : i32
    %c0_i32_0 = arith.constant 0 : i32
    return %arg0, %c0_i32 : i32, i32
  }
}

</mosaic_0001>

<llo_original>
// kernel: tpu_custom_call.1
$region0: #{tpu_custom_call.1}
  #allocation0 [shape = 'u32[]', space=smem, size = 0x4, offset = 0x4, fixed_abs, tag = 'smem constant byte address 0x4 - core index']
  #allocation1 [shape = 'u32[72,128]{1,0:T(1,128)}', space=vmem, size = 0x9000, scoped, tag = 'internal scratch']
  %s0 = inlined_call_operand.vmem [shape: bf16[2048,4], index: 0, kind: input, shape index: {}]
  %s1 = inlined_call_operand.vmem [shape: f32[2048,1], index: 1, kind: input, shape index: {}]
  %s2 = inlined_call_operand.vmem [shape: bf16[4,4], index: 2, kind: input, shape index: {}]
  %s3 = inlined_call_operand.vmem [shape: f32[1,4], index: 3, kind: input, shape index: {}]
  %s4 = inlined_call_operand.vmem [shape: f32[1,4], index: 4, kind: input, shape index: {}]
  %s5 = inlined_call_operand.vmem [shape: bf16[4,4], index: 5, kind: input, shape index: {}]
  %s6 = inlined_call_operand.vmem [shape: f32[1,4], index: 6, kind: input, shape index: {}]
  %s7 = inlined_call_operand.vmem [shape: f32[1,4], index: 7, kind: input, shape index: {}]
  %s8 = inlined_call_operand.vmem [shape: bf16[2048,4], index: 8, kind: output, shape index: {0}]
  %s9 = inlined_call_operand.vmem [shape: bf16[2048,4], index: 9, kind: output, shape index: {1}]
  %10 = xla_tuple %s8, %s9
  %s11 = sld [smem:[#allocation0]]
  $region73: #{tpu_custom_call.1} parent=0
    _
  %s13 = ssub.s32 1, %s11
  %s14 = scalar_select 0, %s13, %s11
  loop: start=0, step=1, limit=6
  $region2: #{tpu_custom_call.1} parent=0 // loop_pre_header
    _
  $region3: #{tpu_custom_call.1} parent=0 // loop_header
    %s16 = sphi 0, %s20
    %p17 = scmp.ge.s32.totalorder %s16, 6
    %s26 = sphi 0, %s28
    %s29 = sphi 0, %s26
    %s30 = sphi 0, %s29
    %s46 = sphi 0, %s30
    %s52 = sphi 0, %s54
    %s55 = sphi 0, %s52
    %s56 = sphi 0, %s55
    %s72 = sphi 0, %s56
    %s76 = sphi 0, %s76
    %s78 = sphi 0, %s76
    %s79 = sphi 0, %s78
    %s93 = sphi 0, %s79
    %s97 = sphi 0, %s97
    %s99 = sphi 0, %s97
    %s100 = sphi 0, %s99
    %s114 = sphi 0, %s100
    %s118 = sphi 0, %s118
    %s120 = sphi 0, %s118
    %s121 = sphi 0, %s120
    %s135 = sphi 0, %s121
    %s139 = sphi 0, %s139
    %s141 = sphi 0, %s139
    %s142 = sphi 0, %s141
    %s156 = sphi 0, %s142
    %s160 = sphi 0, %s160
    %s162 = sphi 0, %s160
    %s163 = sphi 0, %s162
    %s177 = sphi 0, %s163
    %s181 = sphi 0, %s181
    %s183 = sphi 0, %s181
    %s184 = sphi 0, %s183
    %s198 = sphi 0, %s184
    %s204 = sphi 0, %s206
    %s207 = sphi 0, %s204
    %s208 = sphi 0, %s207
    %s224 = sphi 0, %s208
    %s230 = sphi 0, %s232
    %s233 = sphi 0, %s230
    %s234 = sphi 0, %s233
    %s250 = sphi 0, %s234
  $region4: #{tpu_custom_call.1} parent=0 // loop_header_branch
    %19 = sbr.rel (%p17) target = $region8
  $region5: #{tpu_custom_call.1} parent=0 // loop_body
    %s21 = ssub.s32 %s16, 1
    %s22 = ssub.s32 %s16, 2
    %s23 = sadd.s32 %s16, 1
    %s24 = ssub.s32 %s16, %s23
    %p25 = scmp.eq.s32.totalorder %s24, 0
    %s27 = sadd.s32 %s26, 1
    %s28 = scalar_select %p25, %s26, %s27
    %p31 = pneg %p25
    %p32 = scmp.eq.s32.totalorder %s16, 3
    %p33 = por %p31, %p32
    %p34 = scmp.ne.s32.totalorder %s26, %s29
    %p35 = scmp.eq.s32.totalorder %s16, 0
    %p36 = por %p34, %p35
    %p37 = scmp.ne.s32.totalorder %s26, %s29
    %p38 = scmp.eq.s32.totalorder %s21, 3
    %p39 = por %p37, %p38
    %p40 = scmp.ne.s32.totalorder %s29, %s30
    %p41 = scmp.eq.s32.totalorder %s21, 0
    %p42 = por %p40, %p41
    %p43 = scmp.ne.s32.totalorder %s29, %s30
    %p44 = scmp.eq.s32.totalorder %s22, 3
    %p45 = por %p43, %p44
    %p47 = scmp.ne.s32.totalorder %s30, %s46
    %p48 = scmp.eq.s32.totalorder %s22, 0
    %p49 = por %p47, %p48
    %s50 = ssub.s32 %s16, %s23
    %p51 = scmp.eq.s32.totalorder %s50, 0
    %s53 = sadd.s32 %s52, 1
    %s54 = scalar_select %p51, %s52, %s53
    %p57 = pneg %p51
    %p58 = scmp.eq.s32.totalorder %s16, 3
    %p59 = por %p57, %p58
    %p60 = scmp.ne.s32.totalorder %s52, %s55
    %p61 = scmp.eq.s32.totalorder %s16, 0
    %p62 = por %p60, %p61
    %p63 = scmp.ne.s32.totalorder %s52, %s55
    %p64 = scmp.eq.s32.totalorder %s21, 3
    %p65 = por %p63, %p64
    %p66 = scmp.ne.s32.totalorder %s55, %s56
    %p67 = scmp.eq.s32.totalorder %s21, 0
    %p68 = por %p66, %p67
    %p69 = scmp.ne.s32.totalorder %s55, %s56
    %p70 = scmp.eq.s32.totalorder %s22, 3
    %p71 = por %p69, %p70
    %p73 = scmp.ne.s32.totalorder %s56, %s72
    %p74 = scmp.eq.s32.totalorder %s22, 0
    %p75 = por %p73, %p74
    %s77 = sadd.s32 %s76, 1
    %p80 = scmp.eq.s32.totalorder %s16, 3
    %p81 = scmp.ne.s32.totalorder %s76, %s78
    %p82 = scmp.eq.s32.totalorder %s16, 0
    %p83 = por %p81, %p82
    %p84 = scmp.ne.s32.totalorder %s76, %s78
    %p85 = scmp.eq.s32.totalorder %s21, 3
    %p86 = por %p84, %p85
    %p87 = scmp.ne.s32.totalorder %s78, %s79
    %p88 = scmp.eq.s32.totalorder %s21, 0
    %p89 = por %p87, %p88
    %p90 = scmp.ne.s32.totalorder %s78, %s79
    %p91 = scmp.eq.s32.totalorder %s22, 3
    %p92 = por %p90, %p91
    %p94 = scmp.ne.s32.totalorder %s79, %s93
    %p95 = scmp.eq.s32.totalorder %s22, 0
    %p96 = por %p94, %p95
    %s98 = sadd.s32 %s97, 1
    %p101 = scmp.eq.s32.totalorder %s16, 3
    %p102 = scmp.ne.s32.totalorder %s97, %s99
    %p103 = scmp.eq.s32.totalorder %s16, 0
    %p104 = por %p102, %p103
    %p105 = scmp.ne.s32.totalorder %s97, %s99
    %p106 = scmp.eq.s32.totalorder %s21, 3
    %p107 = por %p105, %p106
    %p108 = scmp.ne.s32.totalorder %s99, %s100
    %p109 = scmp.eq.s32.totalorder %s21, 0
    %p110 = por %p108, %p109
    %p111 = scmp.ne.s32.totalorder %s99, %s100
    %p112 = scmp.eq.s32.totalorder %s22, 3
    %p113 = por %p111, %p112
    %p115 = scmp.ne.s32.totalorder %s100, %s114
    %p116 = scmp.eq.s32.totalorder %s22, 0
    %p117 = por %p115, %p116
    %s119 = sadd.s32 %s118, 1
    %p122 = scmp.eq.s32.totalorder %s16, 3
    %p123 = scmp.ne.s32.totalorder %s118, %s120
    %p124 = scmp.eq.s32.totalorder %s16, 0
    %p125 = por %p123, %p124
    %p126 = scmp.ne.s32.totalorder %s118, %s120
    %p127 = scmp.eq.s32.totalorder %s21, 3
    %p128 = por %p126, %p127
    %p129 = scmp.ne.s32.totalorder %s120, %s121
    %p130 = scmp.eq.s32.totalorder %s21, 0
    %p131 = por %p129, %p130
    %p132 = scmp.ne.s32.totalorder %s120, %s121
    %p133 = scmp.eq.s32.totalorder %s22, 3
    %p134 = por %p132, %p133
    %p136 = scmp.ne.s32.totalorder %s121, %s135
    %p137 = scmp.eq.s32.totalorder %s22, 0
    %p138 = por %p136, %p137
    %s140 = sadd.s32 %s139, 1
    %p143 = scmp.eq.s32.totalorder %s16, 3
    %p144 = scmp.ne.s32.totalorder %s139, %s141
    %p145 = scmp.eq.s32.totalorder %s16, 0
    %p146 = por %p144, %p145
    %p147 = scmp.ne.s32.totalorder %s139, %s141
    %p148 = scmp.eq.s32.totalorder %s21, 3
    %p149 = por %p147, %p148
    %p150 = scmp.ne.s32.totalorder %s141, %s142
    %p151 = scmp.eq.s32.totalorder %s21, 0
    %p152 = por %p150, %p151
    %p153 = scmp.ne.s32.totalorder %s141, %s142
    %p154 = scmp.eq.s32.totalorder %s22, 3
    %p155 = por %p153, %p154
    %p157 = scmp.ne.s32.totalorder %s142, %s156
    %p158 = scmp.eq.s32.totalorder %s22, 0
    %p159 = por %p157, %p158
    %s161 = sadd.s32 %s160, 1
    %p164 = scmp.eq.s32.totalorder %s16, 3
    %p165 = scmp.ne.s32.totalorder %s160, %s162
    %p166 = scmp.eq.s32.totalorder %s16, 0
    %p167 = por %p165, %p166
    %p168 = scmp.ne.s32.totalorder %s160, %s162
    %p169 = scmp.eq.s32.totalorder %s21, 3
    %p170 = por %p168, %p169
    %p171 = scmp.ne.s32.totalorder %s162, %s163
    %p172 = scmp.eq.s32.totalorder %s21, 0
    %p173 = por %p171, %p172
    %p174 = scmp.ne.s32.totalorder %s162, %s163
    %p175 = scmp.eq.s32.totalorder %s22, 3
    %p176 = por %p174, %p175
    %p178 = scmp.ne.s32.totalorder %s163, %s177
    %p179 = scmp.eq.s32.totalorder %s22, 0
    %p180 = por %p178, %p179
    %s182 = sadd.s32 %s181, 1
    %p185 = scmp.eq.s32.totalorder %s16, 3
    %p186 = scmp.ne.s32.totalorder %s181, %s183
    %p187 = scmp.eq.s32.totalorder %s16, 0
    %p188 = por %p186, %p187
    %p189 = scmp.ne.s32.totalorder %s181, %s183
    %p190 = scmp.eq.s32.totalorder %s21, 3
    %p191 = por %p189, %p190
    %p192 = scmp.ne.s32.totalorder %s183, %s184
    %p193 = scmp.eq.s32.totalorder %s21, 0
    %p194 = por %p192, %p193
    %p195 = scmp.ne.s32.totalorder %s183, %s184
    %p196 = scmp.eq.s32.totalorder %s22, 3
    %p197 = por %p195, %p196
    %p199 = scmp.ne.s32.totalorder %s184, %s198
    %p200 = scmp.eq.s32.totalorder %s22, 0
    %p201 = por %p199, %p200
    %s202 = ssub.s32 %s16, %s23
    %p203 = scmp.eq.s32.totalorder %s202, 0
    %s205 = sadd.s32 %s204, 1
    %s206 = scalar_select %p203, %s204, %s205
    %p209 = pneg %p203
    %p210 = scmp.eq.s32.totalorder %s16, 3
    %p211 = por %p209, %p210
    %p212 = scmp.ne.s32.totalorder %s204, %s207
    %p213 = scmp.eq.s32.totalorder %s16, 0
    %p214 = por %p212, %p213
    %p215 = scmp.ne.s32.totalorder %s204, %s207
    %p216 = scmp.eq.s32.totalorder %s21, 3
    %p217 = por %p215, %p216
    %p218 = scmp.ne.s32.totalorder %s207, %s208
    %p219 = scmp.eq.s32.totalorder %s21, 0
    %p220 = por %p218, %p219
    %p221 = scmp.ne.s32.totalorder %s207, %s208
    %p222 = scmp.eq.s32.totalorder %s22, 3
    %p223 = por %p221, %p222
    %p225 = scmp.ne.s32.totalorder %s208, %s224
    %p226 = scmp.eq.s32.totalorder %s22, 0
    %p227 = por %p225, %p226
    %s228 = ssub.s32 %s16, %s23
    %p229 = scmp.eq.s32.totalorder %s228, 0
    %s231 = sadd.s32 %s230, 1
    %s232 = scalar_select %p229, %s230, %s231
    %p235 = pneg %p229
    %p236 = scmp.eq.s32.totalorder %s16, 3
    %p237 = por %p235, %p236
    %p238 = scmp.ne.s32.totalorder %s230, %s233
    %p239 = scmp.eq.s32.totalorder %s16, 0
    %p240 = por %p238, %p239
    %p241 = scmp.ne.s32.totalorder %s230, %s233
    %p242 = scmp.eq.s32.totalorder %s21, 3
    %p243 = por %p241, %p242
    %p244 = scmp.ne.s32.totalorder %s233, %s234
    %p245 = scmp.eq.s32.totalorder %s21, 0
    %p246 = por %p244, %p245
    %p247 = scmp.ne.s32.totalorder %s233, %s234
    %p248 = scmp.eq.s32.totalorder %s22, 3
    %p249 = por %p247, %p248
    %p251 = scmp.ne.s32.totalorder %s234, %s250
    %p252 = scmp.eq.s32.totalorder %s22, 0
    %p253 = por %p251, %p252
    %p254 = scmp.le.s32.totalorder 1, %s16
    %p255 = scmp.lt.s32.totalorder %s16, 5
    %p256 = pnand %p254, %p255
    %p257 = pneg %p256
    // Predicated region
    $region9: #{tpu_custom_call.1} parent=5 // pred_check
      _
    $region10: #{tpu_custom_call.1} parent=5 // pred_check_branch
      %259 = sbr.rel (%p256) target = $region12
    $region11: #{tpu_custom_call.1} parent=5 // pred_region
      %s260 = ssub.s32 %s16, 1
      // Predicated region
      $region13: #{tpu_custom_call.1} parent=11 // pred_check
        %p261 = pneg %p89
      $region14: #{tpu_custom_call.1} parent=11 // pred_check_branch
        %263 = sbr.rel (%p261) target = $region16
      $region15: #{tpu_custom_call.1} parent=11 // pred_region
        _
      $region16: #{tpu_custom_call.1} parent=11 // pred_fallthru
        _
      // Predicated region
      $region17: #{tpu_custom_call.1} parent=11 // pred_check
        %p264 = pneg %p110
      $region18: #{tpu_custom_call.1} parent=11 // pred_check_branch
        %266 = sbr.rel (%p264) target = $region20
      $region19: #{tpu_custom_call.1} parent=11 // pred_region
        _
      $region20: #{tpu_custom_call.1} parent=11 // pred_fallthru
        _
      // Predicated region
      $region21: #{tpu_custom_call.1} parent=11 // pred_check
        %p267 = pneg %p131
      $region22: #{tpu_custom_call.1} parent=11 // pred_check_branch
        %269 = sbr.rel (%p267) target = $region24
      $region23: #{tpu_custom_call.1} parent=11 // pred_region
        _
      $region24: #{tpu_custom_call.1} parent=11 // pred_fallthru
        _
      // Predicated region
      $region25: #{tpu_custom_call.1} parent=11 // pred_check
        %p270 = pneg %p152
      $region26: #{tpu_custom_call.1} parent=11 // pred_check_branch
        %272 = sbr.rel (%p270) target = $region28
      $region27: #{tpu_custom_call.1} parent=11 // pred_region
        _
      $region28: #{tpu_custom_call.1} parent=11 // pred_fallthru
        _
      // Predicated region
      $region29: #{tpu_custom_call.1} parent=11 // pred_check
        %p273 = pneg %p173
      $region30: #{tpu_custom_call.1} parent=11 // pred_check_branch
        %275 = sbr.rel (%p273) target = $region32
      $region31: #{tpu_custom_call.1} parent=11 // pred_region
        _
      $region32: #{tpu_custom_call.1} parent=11 // pred_fallthru
        _
      // Predicated region
      $region33: #{tpu_custom_call.1} parent=11 // pred_check
        %p276 = pneg %p194
      $region34: #{tpu_custom_call.1} parent=11 // pred_check_branch
        %278 = sbr.rel (%p276) target = $region36
      $region35: #{tpu_custom_call.1} parent=11 // pred_region
        _
      $region36: #{tpu_custom_call.1} parent=11 // pred_fallthru
        _
    $region12: #{tpu_custom_call.1} parent=5 // pred_fallthru
      _
    %p279 = scmp.lt.s32.totalorder %s16, 4
    // Predicated region
    $region37: #{tpu_custom_call.1} parent=5 // pred_check
      %p280 = pneg %p279
    $region38: #{tpu_custom_call.1} parent=5 // pred_check_branch
      %282 = sbr.rel (%p280) target = $region40
    $region39: #{tpu_custom_call.1} parent=5 // pred_region
      // Predicated region
      $region41: #{tpu_custom_call.1} parent=39 // pred_check
        %p283 = pneg %p36
      $region42: #{tpu_custom_call.1} parent=39 // pred_check_branch
        %285 = sbr.rel (%p283) target = $region44
      $region43: #{tpu_custom_call.1} parent=39 // pred_region
        %s286 = smul.u32 64, %s16
        %p287 = scmp.lt.s32.totalorder %s286, 255
        %s288 = scalar_select %p287, %s286, 255
        %s289 = smul.addr %s288, 4
        %s290 = scalar_lea.vmem %s0, %s289
        %s291 = smul.u32 64, %s16
      $region44: #{tpu_custom_call.1} parent=39 // pred_fallthru
        _
      // Predicated region
      $region45: #{tpu_custom_call.1} parent=39 // pred_check
        %p292 = pneg %p62
      $region46: #{tpu_custom_call.1} parent=39 // pred_check_branch
        %294 = sbr.rel (%p292) target = $region48
      $region47: #{tpu_custom_call.1} parent=39 // pred_region
        %s295 = smul.u32 64, %s16
        %p296 = scmp.lt.s32.totalorder %s295, 255
        %s297 = scalar_select %p296, %s295, 255
        %s298 = smul.addr %s297, 8
        %s299 = scalar_lea.vmem %s1, %s298
        %s300 = smul.u32 64, %s16
      $region48: #{tpu_custom_call.1} parent=39 // pred_fallthru
        _
    $region40: #{tpu_custom_call.1} parent=5 // pred_fallthru
      _
    %p301 = scmp.le.s32.totalorder 1, %s16
    %p302 = scmp.lt.s32.totalorder %s16, 5
    %p303 = pnand %p301, %p302
    %p304 = pneg %p303
    // Predicated region
    $region49: #{tpu_custom_call.1} parent=5 // pred_check
      _
    $region50: #{tpu_custom_call.1} parent=5 // pred_check_branch
      %306 = sbr.rel (%p303) target = $region52
    $region51: #{tpu_custom_call.1} parent=5 // pred_region
      %s307 = ssub.s32 %s16, 1
      %s308 = smul.u32 64, %s21
      %p309 = scmp.lt.s32.totalorder %s308, 255
      %s310 = scalar_select %p309, %s308, 255
      %s311 = smul.addr %s310, 4
      %s312 = scalar_lea.vmem %s0, %s311
      %p313 = pneg %p42
      %p314 = pneg %p39
      %s315 = smul.u32 64, %s21
      %p316 = scmp.lt.s32.totalorder %s315, 255
      %s317 = scalar_select %p316, %s315, 255
      %s318 = smul.addr %s317, 8
      %s319 = scalar_lea.vmem %s1, %s318
      %p320 = pneg %p68
      %p321 = pneg %p65
      %p322 = pneg %p89
      %p323 = pneg %p86
      %p324 = pneg %p110
      %p325 = pneg %p107
      %p326 = pneg %p131
      %p327 = pneg %p128
      %p328 = pneg %p152
      %p329 = pneg %p149
      %p330 = pneg %p173
      %p331 = pneg %p170
      %p332 = pneg %p194
      %p333 = pneg %p191
      %p334 = pneg %p220
      %p335 = pneg %p217
      %s336 = smul.u32 64, %s21
      %p337 = scmp.lt.s32.totalorder %s336, 255
      %s338 = scalar_select %p337, %s336, 255
      %s339 = smul.addr %s338, 4
      %s340 = scalar_lea.vmem %s8, %s339
      %p341 = pneg %p246
      %p342 = pneg %p243
      %s343 = smul.u32 64, %s21
      %p344 = scmp.lt.s32.totalorder %s343, 255
      %s345 = scalar_select %p344, %s343, 255
      %s346 = smul.addr %s345, 4
      %s347 = scalar_lea.vmem %s9, %s346
      %s348 = smul.u32 64, %s21
      %p349 = scmp.lt.s32.totalorder %s348, 255
      %s350 = scalar_select %p349, %s348, 255
      %s351 = smul.addr %s350, 4
      %s352 = scalar_lea.vmem %s0, %s351
      %s353 = smul.u32 64, %s21
      %s354 = smul.u32 64, %s21
      %p355 = scmp.lt.s32.totalorder %s354, 255
      %s356 = scalar_select %p355, %s354, 255
      %s357 = smul.addr %s356, 8
      %s358 = scalar_lea.vmem %s1, %s357
      %s359 = smul.u32 64, %s21
      %s360 = smul.u32 64, %s21
      %p361 = scmp.lt.s32.totalorder %s360, 255
      %s362 = scalar_select %p361, %s360, 255
      %s363 = smul.addr %s362, 4
      %s364 = scalar_lea.vmem %s8, %s363
      %s365 = smul.u32 64, %s21
      %s366 = smul.u32 64, %s21
      %p367 = scmp.lt.s32.totalorder %s366, 255
      %s368 = scalar_select %p367, %s366, 255
      %s369 = smul.addr %s368, 4
      %s370 = scalar_lea.vmem %s9, %s369
      %s371 = smul.u32 64, %s21
      %v373 = vld [vmem:[%s352] sm:$0xf]
      %v374 = vld [vmem:[%s352 + $0x4] sm:$0xf]
      %v375 = vld [vmem:[%s352 + $0x8] sm:$0xf]
      %v376 = vld [vmem:[%s352 + $0xc] sm:$0xf]
      %v377 = vld [vmem:[%s352 + $0x10] sm:$0xf]
      %v378 = vld [vmem:[%s352 + $0x14] sm:$0xf]
      %v379 = vld [vmem:[%s352 + $0x18] sm:$0xf]
      %v380 = vld [vmem:[%s352 + $0x1c] sm:$0xf]
      %v381 = vld [vmem:[%s352 + $0x20] sm:$0xf]
      %v382 = vld [vmem:[%s352 + $0x24] sm:$0xf]
      %v383 = vld [vmem:[%s352 + $0x28] sm:$0xf]
      %v384 = vld [vmem:[%s352 + $0x2c] sm:$0xf]
      %v385 = vld [vmem:[%s352 + $0x30] sm:$0xf]
      %v386 = vld [vmem:[%s352 + $0x34] sm:$0xf]
      %v387 = vld [vmem:[%s352 + $0x38] sm:$0xf]
      %v388 = vld [vmem:[%s352 + $0x3c] sm:$0xf]
      %v389 = vld [vmem:[%s352 + $0x40] sm:$0xf]
      %v390 = vld [vmem:[%s352 + $0x44] sm:$0xf]
      %v391 = vld [vmem:[%s352 + $0x48] sm:$0xf]
      %v392 = vld [vmem:[%s352 + $0x4c] sm:$0xf]
      %v393 = vld [vmem:[%s352 + $0x50] sm:$0xf]
      %v394 = vld [vmem:[%s352 + $0x54] sm:$0xf]
      %v395 = vld [vmem:[%s352 + $0x58] sm:$0xf]
      %v396 = vld [vmem:[%s352 + $0x5c] sm:$0xf]
      %v397 = vld [vmem:[%s352 + $0x60] sm:$0xf]
      %v398 = vld [vmem:[%s352 + $0x64] sm:$0xf]
      %v399 = vld [vmem:[%s352 + $0x68] sm:$0xf]
      %v400 = vld [vmem:[%s352 + $0x6c] sm:$0xf]
      %v401 = vld [vmem:[%s352 + $0x70] sm:$0xf]
      %v402 = vld [vmem:[%s352 + $0x74] sm:$0xf]
      %v403 = vld [vmem:[%s352 + $0x78] sm:$0xf]
      %v404 = vld [vmem:[%s352 + $0x7c] sm:$0xf]
      %v405 = vld [vmem:[%s352 + $0x80] sm:$0xf]
      %v406 = vld [vmem:[%s352 + $0x84] sm:$0xf]
      %v407 = vld [vmem:[%s352 + $0x88] sm:$0xf]
      %v408 = vld [vmem:[%s352 + $0x8c] sm:$0xf]
      %v409 = vld [vmem:[%s352 + $0x90] sm:$0xf]
      %v410 = vld [vmem:[%s352 + $0x94] sm:$0xf]
      %v411 = vld [vmem:[%s352 + $0x98] sm:$0xf]
      %v412 = vld [vmem:[%s352 + $0x9c] sm:$0xf]
      %v413 = vld [vmem:[%s352 + $0xa0] sm:$0xf]
      %v414 = vld [vmem:[%s352 + $0xa4] sm:$0xf]
      %v415 = vld [vmem:[%s352 + $0xa8] sm:$0xf]
      %v416 = vld [vmem:[%s352 + $0xac] sm:$0xf]
      %v417 = vld [vmem:[%s352 + $0xb0] sm:$0xf]
      %v418 = vld [vmem:[%s352 + $0xb4] sm:$0xf]
      %v419 = vld [vmem:[%s352 + $0xb8] sm:$0xf]
      %v420 = vld [vmem:[%s352 + $0xbc] sm:$0xf]
      %v421 = vld [vmem:[%s352 + $0xc0] sm:$0xf]
      %v422 = vld [vmem:[%s352 + $0xc4] sm:$0xf]
      %v423 = vld [vmem:[%s352 + $0xc8] sm:$0xf]
      %v424 = vld [vmem:[%s352 + $0xcc] sm:$0xf]
      %v425 = vld [vmem:[%s352 + $0xd0] sm:$0xf]
      %v426 = vld [vmem:[%s352 + $0xd4] sm:$0xf]
      %v427 = vld [vmem:[%s352 + $0xd8] sm:$0xf]
      %v428 = vld [vmem:[%s352 + $0xdc] sm:$0xf]
      %v429 = vld [vmem:[%s352 + $0xe0] sm:$0xf]
      %v430 = vld [vmem:[%s352 + $0xe4] sm:$0xf]
      %v431 = vld [vmem:[%s352 + $0xe8] sm:$0xf]
      %v432 = vld [vmem:[%s352 + $0xec] sm:$0xf]
      %v433 = vld [vmem:[%s352 + $0xf0] sm:$0xf]
      %v434 = vld [vmem:[%s352 + $0xf4] sm:$0xf]
      %v435 = vld [vmem:[%s352 + $0xf8] sm:$0xf]
      %v436 = vld [vmem:[%s352 + $0xfc] sm:$0xf]
      %v437 = vld [vmem:[%s358] sm:$0xff]
      %v438 = vld [vmem:[%s358 + $0x8] sm:$0xff]
      %v439 = vld [vmem:[%s358 + $0x10] sm:$0xff]
      %v440 = vld [vmem:[%s358 + $0x18] sm:$0xff]
      %v441 = vld [vmem:[%s358 + $0x20] sm:$0xff]
      %v442 = vld [vmem:[%s358 + $0x28] sm:$0xff]
      %v443 = vld [vmem:[%s358 + $0x30] sm:$0xff]
      %v444 = vld [vmem:[%s358 + $0x38] sm:$0xff]
      %v445 = vld [vmem:[%s358 + $0x40] sm:$0xff]
      %v446 = vld [vmem:[%s358 + $0x48] sm:$0xff]
      %v447 = vld [vmem:[%s358 + $0x50] sm:$0xff]
      %v448 = vld [vmem:[%s358 + $0x58] sm:$0xff]
      %v449 = vld [vmem:[%s358 + $0x60] sm:$0xff]
      %v450 = vld [vmem:[%s358 + $0x68] sm:$0xff]
      %v451 = vld [vmem:[%s358 + $0x70] sm:$0xff]
      %v452 = vld [vmem:[%s358 + $0x78] sm:$0xff]
      %v453 = vld [vmem:[%s358 + $0x80] sm:$0xff]
      %v454 = vld [vmem:[%s358 + $0x88] sm:$0xff]
      %v455 = vld [vmem:[%s358 + $0x90] sm:$0xff]
      %v456 = vld [vmem:[%s358 + $0x98] sm:$0xff]
      %v457 = vld [vmem:[%s358 + $0xa0] sm:$0xff]
      %v458 = vld [vmem:[%s358 + $0xa8] sm:$0xff]
      %v459 = vld [vmem:[%s358 + $0xb0] sm:$0xff]
      %v460 = vld [vmem:[%s358 + $0xb8] sm:$0xff]
      %v461 = vld [vmem:[%s358 + $0xc0] sm:$0xff]
      %v462 = vld [vmem:[%s358 + $0xc8] sm:$0xff]
      %v463 = vld [vmem:[%s358 + $0xd0] sm:$0xff]
      %v464 = vld [vmem:[%s358 + $0xd8] sm:$0xff]
      %v465 = vld [vmem:[%s358 + $0xe0] sm:$0xff]
      %v466 = vld [vmem:[%s358 + $0xe8] sm:$0xff]
      %v467 = vld [vmem:[%s358 + $0xf0] sm:$0xff]
      %v468 = vld [vmem:[%s358 + $0xf8] sm:$0xff]
      %v469 = vld [vmem:[%s358 + $0x100] sm:$0xff]
      %v470 = vld [vmem:[%s358 + $0x108] sm:$0xff]
      %v471 = vld [vmem:[%s358 + $0x110] sm:$0xff]
      %v472 = vld [vmem:[%s358 + $0x118] sm:$0xff]
      %v473 = vld [vmem:[%s358 + $0x120] sm:$0xff]
      %v474 = vld [vmem:[%s358 + $0x128] sm:$0xff]
      %v475 = vld [vmem:[%s358 + $0x130] sm:$0xff]
      %v476 = vld [vmem:[%s358 + $0x138] sm:$0xff]
      %v477 = vld [vmem:[%s358 + $0x140] sm:$0xff]
      %v478 = vld [vmem:[%s358 + $0x148] sm:$0xff]
      %v479 = vld [vmem:[%s358 + $0x150] sm:$0xff]
      %v480 = vld [vmem:[%s358 + $0x158] sm:$0xff]
      %v481 = vld [vmem:[%s358 + $0x160] sm:$0xff]
      %v482 = vld [vmem:[%s358 + $0x168] sm:$0xff]
      %v483 = vld [vmem:[%s358 + $0x170] sm:$0xff]
      %v484 = vld [vmem:[%s358 + $0x178] sm:$0xff]
      %v485 = vld [vmem:[%s358 + $0x180] sm:$0xff]
      %v486 = vld [vmem:[%s358 + $0x188] sm:$0xff]
      %v487 = vld [vmem:[%s358 + $0x190] sm:$0xff]
      %v488 = vld [vmem:[%s358 + $0x198] sm:$0xff]
      %v489 = vld [vmem:[%s358 + $0x1a0] sm:$0xff]
      %v490 = vld [vmem:[%s358 + $0x1a8] sm:$0xff]
      %v491 = vld [vmem:[%s358 + $0x1b0] sm:$0xff]
      %v492 = vld [vmem:[%s358 + $0x1b8] sm:$0xff]
      %v493 = vld [vmem:[%s358 + $0x1c0] sm:$0xff]
      %v494 = vld [vmem:[%s358 + $0x1c8] sm:$0xff]
      %v495 = vld [vmem:[%s358 + $0x1d0] sm:$0xff]
      %v496 = vld [vmem:[%s358 + $0x1d8] sm:$0xff]
      %v497 = vld [vmem:[%s358 + $0x1e0] sm:$0xff]
      %v498 = vld [vmem:[%s358 + $0x1e8] sm:$0xff]
      %v499 = vld [vmem:[%s358 + $0x1f0] sm:$0xff]
      %v500 = vld [vmem:[%s358 + $0x1f8] sm:$0xff]
      %v501 = vld [vmem:[%s2] sm:$0x3]
      %v566 = vunpack.c.l.b16 %v373
      %v567 = vunpack.c.l.b16 %v374
      %v568 = vunpack.c.l.b16 %v375
      %v569 = vunpack.c.l.b16 %v376
      %v570 = vunpack.c.l.b16 %v377
      %v571 = vunpack.c.l.b16 %v378
      %v572 = vunpack.c.l.b16 %v379
      %v573 = vunpack.c.l.b16 %v380
      %v574 = vunpack.c.l.b16 %v381
      %v575 = vunpack.c.l.b16 %v382
      %v576 = vunpack.c.l.b16 %v383
      %v577 = vunpack.c.l.b16 %v384
      %v578 = vunpack.c.l.b16 %v385
      %v579 = vunpack.c.l.b16 %v386
      %v580 = vunpack.c.l.b16 %v387
      %v581 = vunpack.c.l.b16 %v388
      %v582 = vunpack.c.l.b16 %v389
      %v583 = vunpack.c.l.b16 %v390
      %v584 = vunpack.c.l.b16 %v391
      %v585 = vunpack.c.l.b16 %v392
      %v586 = vunpack.c.l.b16 %v393
      %v587 = vunpack.c.l.b16 %v394
      %v588 = vunpack.c.l.b16 %v395
      %v589 = vunpack.c.l.b16 %v396
      %v590 = vunpack.c.l.b16 %v397
      %v591 = vunpack.c.l.b16 %v398
      %v592 = vunpack.c.l.b16 %v399
      %v593 = vunpack.c.l.b16 %v400
      %v594 = vunpack.c.l.b16 %v401
      %v595 = vunpack.c.l.b16 %v402
      %v596 = vunpack.c.l.b16 %v403
      %v597 = vunpack.c.l.b16 %v404
      %v598 = vunpack.c.l.b16 %v405
      %v599 = vunpack.c.l.b16 %v406
      %v600 = vunpack.c.l.b16 %v407
      %v601 = vunpack.c.l.b16 %v408
      %v602 = vunpack.c.l.b16 %v409
      %v603 = vunpack.c.l.b16 %v410
      %v604 = vunpack.c.l.b16 %v411
      %v605 = vunpack.c.l.b16 %v412
      %v606 = vunpack.c.l.b16 %v413
      %v607 = vunpack.c.l.b16 %v414
      %v608 = vunpack.c.l.b16 %v415
      %v609 = vunpack.c.l.b16 %v416
      %v610 = vunpack.c.l.b16 %v417
      %v611 = vunpack.c.l.b16 %v418
      %v612 = vunpack.c.l.b16 %v419
      %v613 = vunpack.c.l.b16 %v420
      %v614 = vunpack.c.l.b16 %v421
      %v615 = vunpack.c.l.b16 %v422
      %v616 = vunpack.c.l.b16 %v423
      %v617 = vunpack.c.l.b16 %v424
      %v618 = vunpack.c.l.b16 %v425
      %v619 = vunpack.c.l.b16 %v426
      %v620 = vunpack.c.l.b16 %v427
      %v621 = vunpack.c.l.b16 %v428
      %v622 = vunpack.c.l.b16 %v429
      %v623 = vunpack.c.l.b16 %v430
      %v624 = vunpack.c.l.b16 %v431
      %v625 = vunpack.c.l.b16 %v432
      %v626 = vunpack.c.l.b16 %v433
      %v627 = vunpack.c.l.b16 %v434
      %v628 = vunpack.c.l.b16 %v435
      %v629 = vunpack.c.l.b16 %v436
      %v630 = vpack.c.b16 %v567, %v566
      %v631 = vpack.c.b16 %v569, %v568
      %v632 = vpack.c.b16 %v571, %v570
      %v633 = vpack.c.b16 %v573, %v572
      %v634 = vpack.c.b16 %v575, %v574
      %v635 = vpack.c.b16 %v577, %v576
      %v636 = vpack.c.b16 %v579, %v578
      %v637 = vpack.c.b16 %v581, %v580
      %v638 = vpack.c.b16 %v583, %v582
      %v639 = vpack.c.b16 %v585, %v584
      %v640 = vpack.c.b16 %v587, %v586
      %v641 = vpack.c.b16 %v589, %v588
      %v642 = vpack.c.b16 %v591, %v590
      %v643 = vpack.c.b16 %v593, %v592
      %v644 = vpack.c.b16 %v595, %v594
      %v645 = vpack.c.b16 %v597, %v596
      %v646 = vpack.c.b16 %v599, %v598
      %v647 = vpack.c.b16 %v601, %v600
      %v648 = vpack.c.b16 %v603, %v602
      %v649 = vpack.c.b16 %v605, %v604
      %v650 = vpack.c.b16 %v607, %v606
      %v651 = vpack.c.b16 %v609, %v608
      %v652 = vpack.c.b16 %v611, %v610
      %v653 = vpack.c.b16 %v613, %v612
      %v654 = vpack.c.b16 %v615, %v614
      %v655 = vpack.c.b16 %v617, %v616
      %v656 = vpack.c.b16 %v619, %v618
      %v657 = vpack.c.b16 %v621, %v620
      %v658 = vpack.c.b16 %v623, %v622
      %v659 = vpack.c.b16 %v625, %v624
      %v660 = vpack.c.b16 %v627, %v626
      %v661 = vpack.c.b16 %v629, %v628
      %vm662 = vcmask 31744
      %v664 = vsel %vm662, %v630, 0
      %v667 = vsel %vm662, %v631, 0
      %v670 = vsel %vm662, %v632, 0
      %v673 = vsel %vm662, %v633, 0
      %v676 = vsel %vm662, %v634, 0
      %v679 = vsel %vm662, %v635, 0
      %v682 = vsel %vm662, %v636, 0
      %v685 = vsel %vm662, %v637, 0
      %v688 = vsel %vm662, %v638, 0
      %v691 = vsel %vm662, %v639, 0
      %v694 = vsel %vm662, %v640, 0
      %v697 = vsel %vm662, %v641, 0
      %v700 = vsel %vm662, %v642, 0
      %v703 = vsel %vm662, %v643, 0
      %v706 = vsel %vm662, %v644, 0
      %v709 = vsel %vm662, %v645, 0
      %v712 = vsel %vm662, %v646, 0
      %v715 = vsel %vm662, %v647, 0
      %v718 = vsel %vm662, %v648, 0
      %v721 = vsel %vm662, %v649, 0
      %v724 = vsel %vm662, %v650, 0
      %v727 = vsel %vm662, %v651, 0
      %v730 = vsel %vm662, %v652, 0
      %v733 = vsel %vm662, %v653, 0
      %v736 = vsel %vm662, %v654, 0
      %v739 = vsel %vm662, %v655, 0
      %v742 = vsel %vm662, %v656, 0
      %v745 = vsel %vm662, %v657, 0
      %v748 = vsel %vm662, %v658, 0
      %v751 = vsel %vm662, %v659, 0
      %v754 = vsel %vm662, %v660, 0
      %v757 = vsel %vm662, %v661, 0
      %vm759 = vcmask 1041408
      %v761 = vsel %vm759, %v501, 0
      %763 = vmatpush.bf16.msra.mxu0 0
      %764 = vmatpush.bf16.msra.mxu0 0
      %765 = vmatpush.bf16.msra.mxu0 0
      %766 = vmatpush.bf16.msra.mxu0 0
      %767 = vmatpush.bf16.msra.mxu0 0
      %768 = vmatpush.bf16.msra.mxu0 0
      %769 = vmatpush.bf16.msra.mxu0 0
      %770 = vmatpush.bf16.msra.mxu0 %v761
      %771 = vmatmul.bf16.gmra.mxu0 %v664
      %v772 = vpop.f32.mrf.mxu0
      %v773 = vadd.f32 0.0, %v772
      %v774 = vpop.f32.mrf.mxu0
      %v775 = vadd.f32 0.0, %v774
      %776 = vmatmul.bf16.gmra.mxu0 %v667
      %v777 = vpop.f32.mrf.mxu0
      %v778 = vadd.f32 0.0, %v777
      %v779 = vpop.f32.mrf.mxu0
      %v780 = vadd.f32 0.0, %v779
      %781 = vmatmul.bf16.gmra.mxu0 %v670
      %v782 = vpop.f32.mrf.mxu0
      %v783 = vadd.f32 0.0, %v782
      %v784 = vpop.f32.mrf.mxu0
      %v785 = vadd.f32 0.0, %v784
      %786 = vmatmul.bf16.gmra.mxu0 %v673
      %v787 = vpop.f32.mrf.mxu0
      %v788 = vadd.f32 0.0, %v787
      %v789 = vpop.f32.mrf.mxu0
      %v790 = vadd.f32 0.0, %v789
      %791 = vmatmul.bf16.gmra.mxu0 %v676
      %v792 = vpop.f32.mrf.mxu0
      %v793 = vadd.f32 0.0, %v792
      %v794 = vpop.f32.mrf.mxu0
      %v795 = vadd.f32 0.0, %v794
      %796 = vmatmul.bf16.gmra.mxu0 %v679
      %v797 = vpop.f32.mrf.mxu0
      %v798 = vadd.f32 0.0, %v797
      %v799 = vpop.f32.mrf.mxu0
      %v800 = vadd.f32 0.0, %v799
      %801 = vmatmul.bf16.gmra.mxu0 %v682
      %v802 = vpop.f32.mrf.mxu0
      %v803 = vadd.f32 0.0, %v802
      %v804 = vpop.f32.mrf.mxu0
      %v805 = vadd.f32 0.0, %v804
      %806 = vmatmul.bf16.gmra.mxu0 %v685
      %v807 = vpop.f32.mrf.mxu0
      %v808 = vadd.f32 0.0, %v807
      %v809 = vpop.f32.mrf.mxu0
      %v810 = vadd.f32 0.0, %v809
      %811 = vmatmul.bf16.gmra.mxu0 %v688
      %v812 = vpop.f32.mrf.mxu0
      %v813 = vadd.f32 0.0, %v812
      %v814 = vpop.f32.mrf.mxu0
      %v815 = vadd.f32 0.0, %v814
      %816 = vmatmul.bf16.gmra.mxu0 %v691
      %v817 = vpop.f32.mrf.mxu0
      %v818 = vadd.f32 0.0, %v817
      %v819 = vpop.f32.mrf.mxu0
      %v820 = vadd.f32 0.0, %v819
      %821 = vmatmul.bf16.gmra.mxu0 %v694
      %v822 = vpop.f32.mrf.mxu0
      %v823 = vadd.f32 0.0, %v822
      %v824 = vpop.f32.mrf.mxu0
      %v825 = vadd.f32 0.0, %v824
      %826 = vmatmul.bf16.gmra.mxu0 %v697
      %v827 = vpop.f32.mrf.mxu0
      %v828 = vadd.f32 0.0, %v827
      %v829 = vpop.f32.mrf.mxu0
      %v830 = vadd.f32 0.0, %v829
      %831 = vmatmul.bf16.gmra.mxu0 %v700
      %v832 = vpop.f32.mrf.mxu0
      %v833 = vadd.f32 0.0, %v832
      %v834 = vpop.f32.mrf.mxu0
      %v835 = vadd.f32 0.0, %v834
      %836 = vmatmul.bf16.gmra.mxu0 %v703
      %v837 = vpop.f32.mrf.mxu0
      %v838 = vadd.f32 0.0, %v837
      %v839 = vpop.f32.mrf.mxu0
      %v840 = vadd.f32 0.0, %v839
      %841 = vmatmul.bf16.gmra.mxu0 %v706
      %v842 = vpop.f32.mrf.mxu0
      %v843 = vadd.f32 0.0, %v842
      %v844 = vpop.f32.mrf.mxu0
      %v845 = vadd.f32 0.0, %v844
      %846 = vmatmul.bf16.gmra.mxu0 %v709
      %v847 = vpop.f32.mrf.mxu0
      %v848 = vadd.f32 0.0, %v847
      %v849 = vpop.f32.mrf.mxu0
      %v850 = vadd.f32 0.0, %v849
      %851 = vmatmul.bf16.gmra.mxu0 %v712
      %v852 = vpop.f32.mrf.mxu0
      %v853 = vadd.f32 0.0, %v852
      %v854 = vpop.f32.mrf.mxu0
      %v855 = vadd.f32 0.0, %v854
      %856 = vmatmul.bf16.gmra.mxu0 %v715
      %v857 = vpop.f32.mrf.mxu0
      %v858 = vadd.f32 0.0, %v857
      %v859 = vpop.f32.mrf.mxu0
      %v860 = vadd.f32 0.0, %v859
      %861 = vmatmul.bf16.gmra.mxu0 %v718
      %v862 = vpop.f32.mrf.mxu0
      %v863 = vadd.f32 0.0, %v862
      %v864 = vpop.f32.mrf.mxu0
      %v865 = vadd.f32 0.0, %v864
      %866 = vmatmul.bf16.gmra.mxu0 %v721
      %v867 = vpop.f32.mrf.mxu0
      %v868 = vadd.f32 0.0, %v867
      %v869 = vpop.f32.mrf.mxu0
      %v870 = vadd.f32 0.0, %v869
      %871 = vmatmul.bf16.gmra.mxu0 %v724
      %v872 = vpop.f32.mrf.mxu0
      %v873 = vadd.f32 0.0, %v872
      %v874 = vpop.f32.mrf.mxu0
      %v875 = vadd.f32 0.0, %v874
      %876 = vmatmul.bf16.gmra.mxu0 %v727
      %v877 = vpop.f32.mrf.mxu0
      %v878 = vadd.f32 0.0, %v877
      %v879 = vpop.f32.mrf.mxu0
      %v880 = vadd.f32 0.0, %v879
      %881 = vmatmul.bf16.gmra.mxu0 %v730
      %v882 = vpop.f32.mrf.mxu0
      %v883 = vadd.f32 0.0, %v882
      %v884 = vpop.f32.mrf.mxu0
      %v885 = vadd.f32 0.0, %v884
      %886 = vmatmul.bf16.gmra.mxu0 %v733
      %v887 = vpop.f32.mrf.mxu0
      %v888 = vadd.f32 0.0, %v887
      %v889 = vpop.f32.mrf.mxu0
      %v890 = vadd.f32 0.0, %v889
      %891 = vmatmul.bf16.gmra.mxu0 %v736
      %v892 = vpop.f32.mrf.mxu0
      %v893 = vadd.f32 0.0, %v892
      %v894 = vpop.f32.mrf.mxu0
      %v895 = vadd.f32 0.0, %v894
      %896 = vmatmul.bf16.gmra.mxu0 %v739
      %v897 = vpop.f32.mrf.mxu0
      %v898 = vadd.f32 0.0, %v897
      %v899 = vpop.f32.mrf.mxu0
      %v900 = vadd.f32 0.0, %v899
      %901 = vmatmul.bf16.gmra.mxu0 %v742
      %v902 = vpop.f32.mrf.mxu0
      %v903 = vadd.f32 0.0, %v902
      %v904 = vpop.f32.mrf.mxu0
      %v905 = vadd.f32 0.0, %v904
      %906 = vmatmul.bf16.gmra.mxu0 %v745
      %v907 = vpop.f32.mrf.mxu0
      %v908 = vadd.f32 0.0, %v907
      %v909 = vpop.f32.mrf.mxu0
      %v910 = vadd.f32 0.0, %v909
      %911 = vmatmul.bf16.gmra.mxu0 %v748
      %v912 = vpop.f32.mrf.mxu0
      %v913 = vadd.f32 0.0, %v912
      %v914 = vpop.f32.mrf.mxu0
      %v915 = vadd.f32 0.0, %v914
      %916 = vmatmul.bf16.gmra.mxu0 %v751
      %v917 = vpop.f32.mrf.mxu0
      %v918 = vadd.f32 0.0, %v917
      %v919 = vpop.f32.mrf.mxu0
      %v920 = vadd.f32 0.0, %v919
      %921 = vmatmul.bf16.gmra.mxu0 %v754
      %v922 = vpop.f32.mrf.mxu0
      %v923 = vadd.f32 0.0, %v922
      %v924 = vpop.f32.mrf.mxu0
      %v925 = vadd.f32 0.0, %v924
      %926 = vmatmul.bf16.gmra.mxu0 %v757
      %v927 = vpop.f32.mrf.mxu0
      %v928 = vadd.f32 0.0, %v927
      %v929 = vpop.f32.mrf.mxu0
      %v930 = vadd.f32 0.0, %v929
      %931 = vdwg.mxu0
      %v932 = vld [vmem:[%s3] sm:$0x1]
      %v934 = vperm.slane %v932, 0
      %v936 = vmul.f32 %v773, %v934
      %v937 = vmul.f32 %v775, %v934
      %v938 = vmul.f32 %v778, %v934
      %v939 = vmul.f32 %v780, %v934
      %v940 = vmul.f32 %v783, %v934
      %v941 = vmul.f32 %v785, %v934
      %v942 = vmul.f32 %v788, %v934
      %v943 = vmul.f32 %v790, %v934
      %v944 = vmul.f32 %v793, %v934
      %v945 = vmul.f32 %v795, %v934
      %v946 = vmul.f32 %v798, %v934
      %v947 = vmul.f32 %v800, %v934
      %v948 = vmul.f32 %v803, %v934
      %v949 = vmul.f32 %v805, %v934
      %v950 = vmul.f32 %v808, %v934
      %v951 = vmul.f32 %v810, %v934
      %v952 = vmul.f32 %v813, %v934
      %v953 = vmul.f32 %v815, %v934
      %v954 = vmul.f32 %v818, %v934
      %v955 = vmul.f32 %v820, %v934
      %v956 = vmul.f32 %v823, %v934
      %v957 = vmul.f32 %v825, %v934
      %v958 = vmul.f32 %v828, %v934
      %v959 = vmul.f32 %v830, %v934
      %v960 = vmul.f32 %v833, %v934
      %v961 = vmul.f32 %v835, %v934
      %v962 = vmul.f32 %v838, %v934
      %v963 = vmul.f32 %v840, %v934
      %v964 = vmul.f32 %v843, %v934
      %v965 = vmul.f32 %v845, %v934
      %v966 = vmul.f32 %v848, %v934
      %v967 = vmul.f32 %v850, %v934
      %v968 = vmul.f32 %v853, %v934
      %v969 = vmul.f32 %v855, %v934
      %v970 = vmul.f32 %v858, %v934
      %v971 = vmul.f32 %v860, %v934
      %v972 = vmul.f32 %v863, %v934
      %v973 = vmul.f32 %v865, %v934
      %v974 = vmul.f32 %v868, %v934
      %v975 = vmul.f32 %v870, %v934
      %v976 = vmul.f32 %v873, %v934
      %v977 = vmul.f32 %v875, %v934
      %v978 = vmul.f32 %v878, %v934
      %v979 = vmul.f32 %v880, %v934
      %v980 = vmul.f32 %v883, %v934
      %v981 = vmul.f32 %v885, %v934
      %v982 = vmul.f32 %v888, %v934
      %v983 = vmul.f32 %v890, %v934
      %v984 = vmul.f32 %v893, %v934
      %v985 = vmul.f32 %v895, %v934
      %v986 = vmul.f32 %v898, %v934
      %v987 = vmul.f32 %v900, %v934
      %v988 = vmul.f32 %v903, %v934
      %v989 = vmul.f32 %v905, %v934
      %v990 = vmul.f32 %v908, %v934
      %v991 = vmul.f32 %v910, %v934
      %v992 = vmul.f32 %v913, %v934
      %v993 = vmul.f32 %v915, %v934
      %v994 = vmul.f32 %v918, %v934
      %v995 = vmul.f32 %v920, %v934
      %v996 = vmul.f32 %v923, %v934
      %v997 = vmul.f32 %v925, %v934
      %v998 = vmul.f32 %v928, %v934
      %v999 = vmul.f32 %v930, %v934
      %v1000 = vld [vmem:[%s4] sm:$0x1]
      %v1002 = vperm.slane %v1000, 0
      %v1004 = vadd.f32 %v936, %v1002
      %v1005 = vadd.f32 %v937, %v1002
      %v1006 = vadd.f32 %v938, %v1002
      %v1007 = vadd.f32 %v939, %v1002
      %v1008 = vadd.f32 %v940, %v1002
      %v1009 = vadd.f32 %v941, %v1002
      %v1010 = vadd.f32 %v942, %v1002
      %v1011 = vadd.f32 %v943, %v1002
      %v1012 = vadd.f32 %v944, %v1002
      %v1013 = vadd.f32 %v945, %v1002
      %v1014 = vadd.f32 %v946, %v1002
      %v1015 = vadd.f32 %v947, %v1002
      %v1016 = vadd.f32 %v948, %v1002
      %v1017 = vadd.f32 %v949, %v1002
      %v1018 = vadd.f32 %v950, %v1002
      %v1019 = vadd.f32 %v951, %v1002
      %v1020 = vadd.f32 %v952, %v1002
      %v1021 = vadd.f32 %v953, %v1002
      %v1022 = vadd.f32 %v954, %v1002
      %v1023 = vadd.f32 %v955, %v1002
      %v1024 = vadd.f32 %v956, %v1002
      %v1025 = vadd.f32 %v957, %v1002
      %v1026 = vadd.f32 %v958, %v1002
      %v1027 = vadd.f32 %v959, %v1002
      %v1028 = vadd.f32 %v960, %v1002
      %v1029 = vadd.f32 %v961, %v1002
      %v1030 = vadd.f32 %v962, %v1002
      %v1031 = vadd.f32 %v963, %v1002
      %v1032 = vadd.f32 %v964, %v1002
      %v1033 = vadd.f32 %v965, %v1002
      %v1034 = vadd.f32 %v966, %v1002
      %v1035 = vadd.f32 %v967, %v1002
      %v1036 = vadd.f32 %v968, %v1002
      %v1037 = vadd.f32 %v969, %v1002
      %v1038 = vadd.f32 %v970, %v1002
      %v1039 = vadd.f32 %v971, %v1002
      %v1040 = vadd.f32 %v972, %v1002
      %v1041 = vadd.f32 %v973, %v1002
      %v1042 = vadd.f32 %v974, %v1002
      %v1043 = vadd.f32 %v975, %v1002
      %v1044 = vadd.f32 %v976, %v1002
      %v1045 = vadd.f32 %v977, %v1002
      %v1046 = vadd.f32 %v978, %v1002
      %v1047 = vadd.f32 %v979, %v1002
      %v1048 = vadd.f32 %v980, %v1002
      %v1049 = vadd.f32 %v981, %v1002
      %v1050 = vadd.f32 %v982, %v1002
      %v1051 = vadd.f32 %v983, %v1002
      %v1052 = vadd.f32 %v984, %v1002
      %v1053 = vadd.f32 %v985, %v1002
      %v1054 = vadd.f32 %v986, %v1002
      %v1055 = vadd.f32 %v987, %v1002
      %v1056 = vadd.f32 %v988, %v1002
      %v1057 = vadd.f32 %v989, %v1002
      %v1058 = vadd.f32 %v990, %v1002
      %v1059 = vadd.f32 %v991, %v1002
      %v1060 = vadd.f32 %v992, %v1002
      %v1061 = vadd.f32 %v993, %v1002
      %v1062 = vadd.f32 %v994, %v1002
      %v1063 = vadd.f32 %v995, %v1002
      %v1064 = vadd.f32 %v996, %v1002
      %v1065 = vadd.f32 %v997, %v1002
      %v1066 = vadd.f32 %v998, %v1002
      %v1067 = vadd.f32 %v999, %v1002
      %v1068 = vsub.f32 0.0, %v1004
      %v1069 = vsub.f32 0.0, %v1005
      %v1070 = vsub.f32 0.0, %v1006
      %v1071 = vsub.f32 0.0, %v1007
      %v1072 = vsub.f32 0.0, %v1008
      %v1073 = vsub.f32 0.0, %v1009
      %v1074 = vsub.f32 0.0, %v1010
      %v1075 = vsub.f32 0.0, %v1011
      %v1076 = vsub.f32 0.0, %v1012
      %v1077 = vsub.f32 0.0, %v1013
      %v1078 = vsub.f32 0.0, %v1014
      %v1079 = vsub.f32 0.0, %v1015
      %v1080 = vsub.f32 0.0, %v1016
      %v1081 = vsub.f32 0.0, %v1017
      %v1082 = vsub.f32 0.0, %v1018
      %v1083 = vsub.f32 0.0, %v1019
      %v1084 = vsub.f32 0.0, %v1020
      %v1085 = vsub.f32 0.0, %v1021
      %v1086 = vsub.f32 0.0, %v1022
      %v1087 = vsub.f32 0.0, %v1023
      %v1088 = vsub.f32 0.0, %v1024
      %v1089 = vsub.f32 0.0, %v1025
      %v1090 = vsub.f32 0.0, %v1026
      %v1091 = vsub.f32 0.0, %v1027
      %v1092 = vsub.f32 0.0, %v1028
      %v1093 = vsub.f32 0.0, %v1029
      %v1094 = vsub.f32 0.0, %v1030
      %v1095 = vsub.f32 0.0, %v1031
      %v1096 = vsub.f32 0.0, %v1032
      %v1097 = vsub.f32 0.0, %v1033
      %v1098 = vsub.f32 0.0, %v1034
      %v1099 = vsub.f32 0.0, %v1035
      %v1100 = vsub.f32 0.0, %v1036
      %v1101 = vsub.f32 0.0, %v1037
      %v1102 = vsub.f32 0.0, %v1038
      %v1103 = vsub.f32 0.0, %v1039
      %v1104 = vsub.f32 0.0, %v1040
      %v1105 = vsub.f32 0.0, %v1041
      %v1106 = vsub.f32 0.0, %v1042
      %v1107 = vsub.f32 0.0, %v1043
      %v1108 = vsub.f32 0.0, %v1044
      %v1109 = vsub.f32 0.0, %v1045
      %v1110 = vsub.f32 0.0, %v1046
      %v1111 = vsub.f32 0.0, %v1047
      %v1112 = vsub.f32 0.0, %v1048
      %v1113 = vsub.f32 0.0, %v1049
      %v1114 = vsub.f32 0.0, %v1050
      %v1115 = vsub.f32 0.0, %v1051
      %v1116 = vsub.f32 0.0, %v1052
      %v1117 = vsub.f32 0.0, %v1053
      %v1118 = vsub.f32 0.0, %v1054
      %v1119 = vsub.f32 0.0, %v1055
      %v1120 = vsub.f32 0.0, %v1056
      %v1121 = vsub.f32 0.0, %v1057
      %v1122 = vsub.f32 0.0, %v1058
      %v1123 = vsub.f32 0.0, %v1059
      %v1124 = vsub.f32 0.0, %v1060
      %v1125 = vsub.f32 0.0, %v1061
      %v1126 = vsub.f32 0.0, %v1062
      %v1127 = vsub.f32 0.0, %v1063
      %v1128 = vsub.f32 0.0, %v1064
      %v1129 = vsub.f32 0.0, %v1065
      %v1130 = vsub.f32 0.0, %v1066
      %v1131 = vsub.f32 0.0, %v1067
      %v1132 = vmul.f32 %v1068, 1.442695
      %v1133 = vpow.pop %v1132
      %v1134 = vmul.f32 %v1069, 1.442695
      %v1135 = vpow.pop %v1134
      %v1136 = vmul.f32 %v1070, 1.442695
      %v1137 = vpow.pop %v1136
      %v1138 = vmul.f32 %v1071, 1.442695
      %v1139 = vpow.pop %v1138
      %v1140 = vmul.f32 %v1072, 1.442695
      %v1141 = vpow.pop %v1140
      %v1142 = vmul.f32 %v1073, 1.442695
      %v1143 = vpow.pop %v1142
      %v1144 = vmul.f32 %v1074, 1.442695
      %v1145 = vpow.pop %v1144
      %v1146 = vmul.f32 %v1075, 1.442695
      %v1147 = vpow.pop %v1146
      %v1148 = vmul.f32 %v1076, 1.442695
      %v1149 = vpow.pop %v1148
      %v1150 = vmul.f32 %v1077, 1.442695
      %v1151 = vpow.pop %v1150
      %v1152 = vmul.f32 %v1078, 1.442695
      %v1153 = vpow.pop %v1152
      %v1154 = vmul.f32 %v1079, 1.442695
      %v1155 = vpow.pop %v1154
      %v1156 = vmul.f32 %v1080, 1.442695
      %v1157 = vpow.pop %v1156
      %v1158 = vmul.f32 %v1081, 1.442695
      %v1159 = vpow.pop %v1158
      %v1160 = vmul.f32 %v1082, 1.442695
      %v1161 = vpow.pop %v1160
      %v1162 = vmul.f32 %v1083, 1.442695
      %v1163 = vpow.pop %v1162
      %v1164 = vmul.f32 %v1084, 1.442695
      %v1165 = vpow.pop %v1164
      %v1166 = vmul.f32 %v1085, 1.442695
      %v1167 = vpow.pop %v1166
      %v1168 = vmul.f32 %v1086, 1.442695
      %v1169 = vpow.pop %v1168
      %v1170 = vmul.f32 %v1087, 1.442695
      %v1171 = vpow.pop %v1170
      %v1172 = vmul.f32 %v1088, 1.442695
      %v1173 = vpow.pop %v1172
      %v1174 = vmul.f32 %v1089, 1.442695
      %v1175 = vpow.pop %v1174
      %v1176 = vmul.f32 %v1090, 1.442695
      %v1177 = vpow.pop %v1176
      %v1178 = vmul.f32 %v1091, 1.442695
      %v1179 = vpow.pop %v1178
      %v1180 = vmul.f32 %v1092, 1.442695
      %v1181 = vpow.pop %v1180
      %v1182 = vmul.f32 %v1093, 1.442695
      %v1183 = vpow.pop %v1182
      %v1184 = vmul.f32 %v1094, 1.442695
      %v1185 = vpow.pop %v1184
      %v1186 = vmul.f32 %v1095, 1.442695
      %v1187 = vpow.pop %v1186
      %v1188 = vmul.f32 %v1096, 1.442695
      %v1189 = vpow.pop %v1188
      %v1190 = vmul.f32 %v1097, 1.442695
      %v1191 = vpow.pop %v1190
      %v1192 = vmul.f32 %v1098, 1.442695
      %v1193 = vpow.pop %v1192
      %v1194 = vmul.f32 %v1099, 1.442695
      %v1195 = vpow.pop %v1194
      %v1196 = vmul.f32 %v1100, 1.442695
      %v1197 = vpow.pop %v1196
      %v1198 = vmul.f32 %v1101, 1.442695
      %v1199 = vpow.pop %v1198
      %v1200 = vmul.f32 %v1102, 1.442695
      %v1201 = vpow.pop %v1200
      %v1202 = vmul.f32 %v1103, 1.442695
      %v1203 = vpow.pop %v1202
      %v1204 = vmul.f32 %v1104, 1.442695
      %v1205 = vpow.pop %v1204
      %v1206 = vmul.f32 %v1105, 1.442695
      %v1207 = vpow.pop %v1206
      %v1208 = vmul.f32 %v1106, 1.442695
      %v1209 = vpow.pop %v1208
      %v1210 = vmul.f32 %v1107, 1.442695
      %v1211 = vpow.pop %v1210
      %v1212 = vmul.f32 %v1108, 1.442695
      %v1213 = vpow.pop %v1212
      %v1214 = vmul.f32 %v1109, 1.442695
      %v1215 = vpow.pop %v1214
      %v1216 = vmul.f32 %v1110, 1.442695
      %v1217 = vpow.pop %v1216
      %v1218 = vmul.f32 %v1111, 1.442695
      %v1219 = vpow.pop %v1218
      %v1220 = vmul.f32 %v1112, 1.442695
      %v1221 = vpow.pop %v1220
      %v1222 = vmul.f32 %v1113, 1.442695
      %v1223 = vpow.pop %v1222
      %v1224 = vmul.f32 %v1114, 1.442695
      %v1225 = vpow.pop %v1224
      %v1226 = vmul.f32 %v1115, 1.442695
      %v1227 = vpow.pop %v1226
      %v1228 = vmul.f32 %v1116, 1.442695
      %v1229 = vpow.pop %v1228
      %v1230 = vmul.f32 %v1117, 1.442695
      %v1231 = vpow.pop %v1230
      %v1232 = vmul.f32 %v1118, 1.442695
      %v1233 = vpow.pop %v1232
      %v1234 = vmul.f32 %v1119, 1.442695
      %v1235 = vpow.pop %v1234
      %v1236 = vmul.f32 %v1120, 1.442695
      %v1237 = vpow.pop %v1236
      %v1238 = vmul.f32 %v1121, 1.442695
      %v1239 = vpow.pop %v1238
      %v1240 = vmul.f32 %v1122, 1.442695
      %v1241 = vpow.pop %v1240
      %v1242 = vmul.f32 %v1123, 1.442695
      %v1243 = vpow.pop %v1242
      %v1244 = vmul.f32 %v1124, 1.442695
      %v1245 = vpow.pop %v1244
      %v1246 = vmul.f32 %v1125, 1.442695
      %v1247 = vpow.pop %v1246
      %v1248 = vmul.f32 %v1126, 1.442695
      %v1249 = vpow.pop %v1248
      %v1250 = vmul.f32 %v1127, 1.442695
      %v1251 = vpow.pop %v1250
      %v1252 = vmul.f32 %v1128, 1.442695
      %v1253 = vpow.pop %v1252
      %v1254 = vmul.f32 %v1129, 1.442695
      %v1255 = vpow.pop %v1254
      %v1256 = vmul.f32 %v1130, 1.442695
      %v1257 = vpow.pop %v1256
      %v1258 = vmul.f32 %v1131, 1.442695
      %v1259 = vpow.pop %v1258
      %v1260 = vadd.f32 %v1133, 1.0
      %v1261 = vadd.f32 %v1135, 1.0
      %v1262 = vadd.f32 %v1137, 1.0
      %v1263 = vadd.f32 %v1139, 1.0
      %v1264 = vadd.f32 %v1141, 1.0
      %v1265 = vadd.f32 %v1143, 1.0
      %v1266 = vadd.f32 %v1145, 1.0
      %v1267 = vadd.f32 %v1147, 1.0
      %v1268 = vadd.f32 %v1149, 1.0
      %v1269 = vadd.f32 %v1151, 1.0
      %v1270 = vadd.f32 %v1153, 1.0
      %v1271 = vadd.f32 %v1155, 1.0
      %v1272 = vadd.f32 %v1157, 1.0
      %v1273 = vadd.f32 %v1159, 1.0
      %v1274 = vadd.f32 %v1161, 1.0
      %v1275 = vadd.f32 %v1163, 1.0
      %v1276 = vadd.f32 %v1165, 1.0
      %v1277 = vadd.f32 %v1167, 1.0
      %v1278 = vadd.f32 %v1169, 1.0
      %v1279 = vadd.f32 %v1171, 1.0
      %v1280 = vadd.f32 %v1173, 1.0
      %v1281 = vadd.f32 %v1175, 1.0
      %v1282 = vadd.f32 %v1177, 1.0
      %v1283 = vadd.f32 %v1179, 1.0
      %v1284 = vadd.f32 %v1181, 1.0
      %v1285 = vadd.f32 %v1183, 1.0
      %v1286 = vadd.f32 %v1185, 1.0
      %v1287 = vadd.f32 %v1187, 1.0
      %v1288 = vadd.f32 %v1189, 1.0
      %v1289 = vadd.f32 %v1191, 1.0
      %v1290 = vadd.f32 %v1193, 1.0
      %v1291 = vadd.f32 %v1195, 1.0
      %v1292 = vadd.f32 %v1197, 1.0
      %v1293 = vadd.f32 %v1199, 1.0
      %v1294 = vadd.f32 %v1201, 1.0
      %v1295 = vadd.f32 %v1203, 1.0
      %v1296 = vadd.f32 %v1205, 1.0
      %v1297 = vadd.f32 %v1207, 1.0
      %v1298 = vadd.f32 %v1209, 1.0
      %v1299 = vadd.f32 %v1211, 1.0
      %v1300 = vadd.f32 %v1213, 1.0
      %v1301 = vadd.f32 %v1215, 1.0
      %v1302 = vadd.f32 %v1217, 1.0
      %v1303 = vadd.f32 %v1219, 1.0
      %v1304 = vadd.f32 %v1221, 1.0
      %v1305 = vadd.f32 %v1223, 1.0
      %v1306 = vadd.f32 %v1225, 1.0
      %v1307 = vadd.f32 %v1227, 1.0
      %v1308 = vadd.f32 %v1229, 1.0
      %v1309 = vadd.f32 %v1231, 1.0
      %v1310 = vadd.f32 %v1233, 1.0
      %v1311 = vadd.f32 %v1235, 1.0
      %v1312 = vadd.f32 %v1237, 1.0
      %v1313 = vadd.f32 %v1239, 1.0
      %v1314 = vadd.f32 %v1241, 1.0
      %v1315 = vadd.f32 %v1243, 1.0
      %v1316 = vadd.f32 %v1245, 1.0
      %v1317 = vadd.f32 %v1247, 1.0
      %v1318 = vadd.f32 %v1249, 1.0
      %v1319 = vadd.f32 %v1251, 1.0
      %v1320 = vadd.f32 %v1253, 1.0
      %v1321 = vadd.f32 %v1255, 1.0
      %v1322 = vadd.f32 %v1257, 1.0
      %v1323 = vadd.f32 %v1259, 1.0
      %v1324 = vrcp.pop %v1260
      %v1325 = vrcp.pop %v1261
      %v1326 = vrcp.pop %v1262
      %v1327 = vrcp.pop %v1263
      %v1328 = vrcp.pop %v1264
      %v1329 = vrcp.pop %v1265
      %v1330 = vrcp.pop %v1266
      %v1331 = vrcp.pop %v1267
      %v1332 = vrcp.pop %v1268
      %v1333 = vrcp.pop %v1269
      %v1334 = vrcp.pop %v1270
      %v1335 = vrcp.pop %v1271
      %v1336 = vrcp.pop %v1272
      %v1337 = vrcp.pop %v1273
      %v1338 = vrcp.pop %v1274
      %v1339 = vrcp.pop %v1275
      %v1340 = vrcp.pop %v1276
      %v1341 = vrcp.pop %v1277
      %v1342 = vrcp.pop %v1278
      %v1343 = vrcp.pop %v1279
      %v1344 = vrcp.pop %v1280
      %v1345 = vrcp.pop %v1281
      %v1346 = vrcp.pop %v1282
      %v1347 = vrcp.pop %v1283
      %v1348 = vrcp.pop %v1284
      %v1349 = vrcp.pop %v1285
      %v1350 = vrcp.pop %v1286
      %v1351 = vrcp.pop %v1287
      %v1352 = vrcp.pop %v1288
      %v1353 = vrcp.pop %v1289
      %v1354 = vrcp.pop %v1290
      %v1355 = vrcp.pop %v1291
      %v1356 = vrcp.pop %v1292
      %v1357 = vrcp.pop %v1293
      %v1358 = vrcp.pop %v1294
      %v1359 = vrcp.pop %v1295
      %v1360 = vrcp.pop %v1296
      %v1361 = vrcp.pop %v1297
      %v1362 = vrcp.pop %v1298
      %v1363 = vrcp.pop %v1299
      %v1364 = vrcp.pop %v1300
      %v1365 = vrcp.pop %v1301
      %v1366 = vrcp.pop %v1302
      %v1367 = vrcp.pop %v1303
      %v1368 = vrcp.pop %v1304
      %v1369 = vrcp.pop %v1305
      %v1370 = vrcp.pop %v1306
      %v1371 = vrcp.pop %v1307
      %v1372 = vrcp.pop %v1308
      %v1373 = vrcp.pop %v1309
      %v1374 = vrcp.pop %v1310
      %v1375 = vrcp.pop %v1311
      %v1376 = vrcp.pop %v1312
      %v1377 = vrcp.pop %v1313
      %v1378 = vrcp.pop %v1314
      %v1379 = vrcp.pop %v1315
      %v1380 = vrcp.pop %v1316
      %v1381 = vrcp.pop %v1317
      %v1382 = vrcp.pop %v1318
      %v1383 = vrcp.pop %v1319
      %v1384 = vrcp.pop %v1320
      %v1385 = vrcp.pop %v1321
      %v1386 = vrcp.pop %v1322
      %v1387 = vrcp.pop %v1323
      %v1388 = vmul.f32 %v1004, %v1324
      %v1389 = vmul.f32 %v1005, %v1325
      %v1390 = vmul.f32 %v1006, %v1326
      %v1391 = vmul.f32 %v1007, %v1327
      %v1392 = vmul.f32 %v1008, %v1328
      %v1393 = vmul.f32 %v1009, %v1329
      %v1394 = vmul.f32 %v1010, %v1330
      %v1395 = vmul.f32 %v1011, %v1331
      %v1396 = vmul.f32 %v1012, %v1332
      %v1397 = vmul.f32 %v1013, %v1333
      %v1398 = vmul.f32 %v1014, %v1334
      %v1399 = vmul.f32 %v1015, %v1335
      %v1400 = vmul.f32 %v1016, %v1336
      %v1401 = vmul.f32 %v1017, %v1337
      %v1402 = vmul.f32 %v1018, %v1338
      %v1403 = vmul.f32 %v1019, %v1339
      %v1404 = vmul.f32 %v1020, %v1340
      %v1405 = vmul.f32 %v1021, %v1341
      %v1406 = vmul.f32 %v1022, %v1342
      %v1407 = vmul.f32 %v1023, %v1343
      %v1408 = vmul.f32 %v1024, %v1344
      %v1409 = vmul.f32 %v1025, %v1345
      %v1410 = vmul.f32 %v1026, %v1346
      %v1411 = vmul.f32 %v1027, %v1347
      %v1412 = vmul.f32 %v1028, %v1348
      %v1413 = vmul.f32 %v1029, %v1349
      %v1414 = vmul.f32 %v1030, %v1350
      %v1415 = vmul.f32 %v1031, %v1351
      %v1416 = vmul.f32 %v1032, %v1352
      %v1417 = vmul.f32 %v1033, %v1353
      %v1418 = vmul.f32 %v1034, %v1354
      %v1419 = vmul.f32 %v1035, %v1355
      %v1420 = vmul.f32 %v1036, %v1356
      %v1421 = vmul.f32 %v1037, %v1357
      %v1422 = vmul.f32 %v1038, %v1358
      %v1423 = vmul.f32 %v1039, %v1359
      %v1424 = vmul.f32 %v1040, %v1360
      %v1425 = vmul.f32 %v1041, %v1361
      %v1426 = vmul.f32 %v1042, %v1362
      %v1427 = vmul.f32 %v1043, %v1363
      %v1428 = vmul.f32 %v1044, %v1364
      %v1429 = vmul.f32 %v1045, %v1365
      %v1430 = vmul.f32 %v1046, %v1366
      %v1431 = vmul.f32 %v1047, %v1367
      %v1432 = vmul.f32 %v1048, %v1368
      %v1433 = vmul.f32 %v1049, %v1369
      %v1434 = vmul.f32 %v1050, %v1370
      %v1435 = vmul.f32 %v1051, %v1371
      %v1436 = vmul.f32 %v1052, %v1372
      %v1437 = vmul.f32 %v1053, %v1373
      %v1438 = vmul.f32 %v1054, %v1374
      %v1439 = vmul.f32 %v1055, %v1375
      %v1440 = vmul.f32 %v1056, %v1376
      %v1441 = vmul.f32 %v1057, %v1377
      %v1442 = vmul.f32 %v1058, %v1378
      %v1443 = vmul.f32 %v1059, %v1379
      %v1444 = vmul.f32 %v1060, %v1380
      %v1445 = vmul.f32 %v1061, %v1381
      %v1446 = vmul.f32 %v1062, %v1382
      %v1447 = vmul.f32 %v1063, %v1383
      %v1448 = vmul.f32 %v1064, %v1384
      %v1449 = vmul.f32 %v1065, %v1385
      %v1450 = vmul.f32 %v1066, %v1386
      %v1451 = vmul.f32 %v1067, %v1387
      %1453 = vset.pattern.permute.xlu0 0
      %1454 = vperm.xlu0 %1453, %v437
      %v1455 = vpop.permute.xlu0 %1454
      %1458 = vset.pattern.permute.xlu0 0
      %1459 = vperm.xlu0 %1458, %v438
      %v1460 = vpop.permute.xlu0 %1459
      %1463 = vset.pattern.permute.xlu0 0
      %1464 = vperm.xlu0 %1463, %v439
      %v1465 = vpop.permute.xlu0 %1464
      %1468 = vset.pattern.permute.xlu0 0
      %1469 = vperm.xlu0 %1468, %v440
      %v1470 = vpop.permute.xlu0 %1469
      %1473 = vset.pattern.permute.xlu0 0
      %1474 = vperm.xlu0 %1473, %v441
      %v1475 = vpop.permute.xlu0 %1474
      %1478 = vset.pattern.permute.xlu0 0
      %1479 = vperm.xlu0 %1478, %v442
      %v1480 = vpop.permute.xlu0 %1479
      %1483 = vset.pattern.permute.xlu0 0
      %1484 = vperm.xlu0 %1483, %v443
      %v1485 = vpop.permute.xlu0 %1484
      %1488 = vset.pattern.permute.xlu0 0
      %1489 = vperm.xlu0 %1488, %v444
      %v1490 = vpop.permute.xlu0 %1489
      %1493 = vset.pattern.permute.xlu0 0
      %1494 = vperm.xlu0 %1493, %v445
      %v1495 = vpop.permute.xlu0 %1494
      %1498 = vset.pattern.permute.xlu0 0
      %1499 = vperm.xlu0 %1498, %v446
      %v1500 = vpop.permute.xlu0 %1499
      %1503 = vset.pattern.permute.xlu0 0
      %1504 = vperm.xlu0 %1503, %v447
      %v1505 = vpop.permute.xlu0 %1504
      %1508 = vset.pattern.permute.xlu0 0
      %1509 = vperm.xlu0 %1508, %v448
      %v1510 = vpop.permute.xlu0 %1509
      %1513 = vset.pattern.permute.xlu0 0
      %1514 = vperm.xlu0 %1513, %v449
      %v1515 = vpop.permute.xlu0 %1514
      %1518 = vset.pattern.permute.xlu0 0
      %1519 = vperm.xlu0 %1518, %v450
      %v1520 = vpop.permute.xlu0 %1519
      %1523 = vset.pattern.permute.xlu0 0
      %1524 = vperm.xlu0 %1523, %v451
      %v1525 = vpop.permute.xlu0 %1524
      %1528 = vset.pattern.permute.xlu0 0
      %1529 = vperm.xlu0 %1528, %v452
      %v1530 = vpop.permute.xlu0 %1529
      %1533 = vset.pattern.permute.xlu0 0
      %1534 = vperm.xlu0 %1533, %v453
      %v1535 = vpop.permute.xlu0 %1534
      %1538 = vset.pattern.permute.xlu0 0
      %1539 = vperm.xlu0 %1538, %v454
      %v1540 = vpop.permute.xlu0 %1539
      %1543 = vset.pattern.permute.xlu0 0
      %1544 = vperm.xlu0 %1543, %v455
      %v1545 = vpop.permute.xlu0 %1544
      %1548 = vset.pattern.permute.xlu0 0
      %1549 = vperm.xlu0 %1548, %v456
      %v1550 = vpop.permute.xlu0 %1549
      %1553 = vset.pattern.permute.xlu0 0
      %1554 = vperm.xlu0 %1553, %v457
      %v1555 = vpop.permute.xlu0 %1554
      %1558 = vset.pattern.permute.xlu0 0
      %1559 = vperm.xlu0 %1558, %v458
      %v1560 = vpop.permute.xlu0 %1559
      %1563 = vset.pattern.permute.xlu0 0
      %1564 = vperm.xlu0 %1563, %v459
      %v1565 = vpop.permute.xlu0 %1564
      %1568 = vset.pattern.permute.xlu0 0
      %1569 = vperm.xlu0 %1568, %v460
      %v1570 = vpop.permute.xlu0 %1569
      %1573 = vset.pattern.permute.xlu0 0
      %1574 = vperm.xlu0 %1573, %v461
      %v1575 = vpop.permute.xlu0 %1574
      %1578 = vset.pattern.permute.xlu0 0
      %1579 = vperm.xlu0 %1578, %v462
      %v1580 = vpop.permute.xlu0 %1579
      %1583 = vset.pattern.permute.xlu0 0
      %1584 = vperm.xlu0 %1583, %v463
      %v1585 = vpop.permute.xlu0 %1584
      %1588 = vset.pattern.permute.xlu0 0
      %1589 = vperm.xlu0 %1588, %v464
      %v1590 = vpop.permute.xlu0 %1589
      %1593 = vset.pattern.permute.xlu0 0
      %1594 = vperm.xlu0 %1593, %v465
      %v1595 = vpop.permute.xlu0 %1594
      %1598 = vset.pattern.permute.xlu0 0
      %1599 = vperm.xlu0 %1598, %v466
      %v1600 = vpop.permute.xlu0 %1599
      %1603 = vset.pattern.permute.xlu0 0
      %1604 = vperm.xlu0 %1603, %v467
      %v1605 = vpop.permute.xlu0 %1604
      %1608 = vset.pattern.permute.xlu0 0
      %1609 = vperm.xlu0 %1608, %v468
      %v1610 = vpop.permute.xlu0 %1609
      %1613 = vset.pattern.permute.xlu0 0
      %1614 = vperm.xlu0 %1613, %v469
      %v1615 = vpop.permute.xlu0 %1614
      %1618 = vset.pattern.permute.xlu0 0
      %1619 = vperm.xlu0 %1618, %v470
      %v1620 = vpop.permute.xlu0 %1619
      %1623 = vset.pattern.permute.xlu0 0
      %1624 = vperm.xlu0 %1623, %v471
      %v1625 = vpop.permute.xlu0 %1624
      %1628 = vset.pattern.permute.xlu0 0
      %1629 = vperm.xlu0 %1628, %v472
      %v1630 = vpop.permute.xlu0 %1629
      %1633 = vset.pattern.permute.xlu0 0
      %1634 = vperm.xlu0 %1633, %v473
      %v1635 = vpop.permute.xlu0 %1634
      %1638 = vset.pattern.permute.xlu0 0
      %1639 = vperm.xlu0 %1638, %v474
      %v1640 = vpop.permute.xlu0 %1639
      %1643 = vset.pattern.permute.xlu0 0
      %1644 = vperm.xlu0 %1643, %v475
      %v1645 = vpop.permute.xlu0 %1644
      %1648 = vset.pattern.permute.xlu0 0
      %1649 = vperm.xlu0 %1648, %v476
      %v1650 = vpop.permute.xlu0 %1649
      %1653 = vset.pattern.permute.xlu0 0
      %1654 = vperm.xlu0 %1653, %v477
      %v1655 = vpop.permute.xlu0 %1654
      %1658 = vset.pattern.permute.xlu0 0
      %1659 = vperm.xlu0 %1658, %v478
      %v1660 = vpop.permute.xlu0 %1659
      %1663 = vset.pattern.permute.xlu0 0
      %1664 = vperm.xlu0 %1663, %v479
      %v1665 = vpop.permute.xlu0 %1664
      %1668 = vset.pattern.permute.xlu0 0
      %1669 = vperm.xlu0 %1668, %v480
      %v1670 = vpop.permute.xlu0 %1669
      %1673 = vset.pattern.permute.xlu0 0
      %1674 = vperm.xlu0 %1673, %v481
      %v1675 = vpop.permute.xlu0 %1674
      %1678 = vset.pattern.permute.xlu0 0
      %1679 = vperm.xlu0 %1678, %v482
      %v1680 = vpop.permute.xlu0 %1679
      %1683 = vset.pattern.permute.xlu0 0
      %1684 = vperm.xlu0 %1683, %v483
      %v1685 = vpop.permute.xlu0 %1684
      %1688 = vset.pattern.permute.xlu0 0
      %1689 = vperm.xlu0 %1688, %v484
      %v1690 = vpop.permute.xlu0 %1689
      %1693 = vset.pattern.permute.xlu0 0
      %1694 = vperm.xlu0 %1693, %v485
      %v1695 = vpop.permute.xlu0 %1694
      %1698 = vset.pattern.permute.xlu0 0
      %1699 = vperm.xlu0 %1698, %v486
      %v1700 = vpop.permute.xlu0 %1699
      %1703 = vset.pattern.permute.xlu0 0
      %1704 = vperm.xlu0 %1703, %v487
      %v1705 = vpop.permute.xlu0 %1704
      %1708 = vset.pattern.permute.xlu0 0
      %1709 = vperm.xlu0 %1708, %v488
      %v1710 = vpop.permute.xlu0 %1709
      %1713 = vset.pattern.permute.xlu0 0
      %1714 = vperm.xlu0 %1713, %v489
      %v1715 = vpop.permute.xlu0 %1714
      %1718 = vset.pattern.permute.xlu0 0
      %1719 = vperm.xlu0 %1718, %v490
      %v1720 = vpop.permute.xlu0 %1719
      %1723 = vset.pattern.permute.xlu0 0
      %1724 = vperm.xlu0 %1723, %v491
      %v1725 = vpop.permute.xlu0 %1724
      %1728 = vset.pattern.permute.xlu0 0
      %1729 = vperm.xlu0 %1728, %v492
      %v1730 = vpop.permute.xlu0 %1729
      %1733 = vset.pattern.permute.xlu0 0
      %1734 = vperm.xlu0 %1733, %v493
      %v1735 = vpop.permute.xlu0 %1734
      %1738 = vset.pattern.permute.xlu0 0
      %1739 = vperm.xlu0 %1738, %v494
      %v1740 = vpop.permute.xlu0 %1739
      %1743 = vset.pattern.permute.xlu0 0
      %1744 = vperm.xlu0 %1743, %v495
      %v1745 = vpop.permute.xlu0 %1744
      %1748 = vset.pattern.permute.xlu0 0
      %1749 = vperm.xlu0 %1748, %v496
      %v1750 = vpop.permute.xlu0 %1749
      %1753 = vset.pattern.permute.xlu0 0
      %1754 = vperm.xlu0 %1753, %v497
      %v1755 = vpop.permute.xlu0 %1754
      %1758 = vset.pattern.permute.xlu0 0
      %1759 = vperm.xlu0 %1758, %v498
      %v1760 = vpop.permute.xlu0 %1759
      %1763 = vset.pattern.permute.xlu0 0
      %1764 = vperm.xlu0 %1763, %v499
      %v1765 = vpop.permute.xlu0 %1764
      %1768 = vset.pattern.permute.xlu0 0
      %1769 = vperm.xlu0 %1768, %v500
      %v1770 = vpop.permute.xlu0 %1769
      %v1772 = vmul.f32 %v1388, %v1455
      %v1773 = vmul.f32 %v1389, %v1460
      %v1774 = vmul.f32 %v1390, %v1465
      %v1775 = vmul.f32 %v1391, %v1470
      %v1776 = vmul.f32 %v1392, %v1475
      %v1777 = vmul.f32 %v1393, %v1480
      %v1778 = vmul.f32 %v1394, %v1485
      %v1779 = vmul.f32 %v1395, %v1490
      %v1780 = vmul.f32 %v1396, %v1495
      %v1781 = vmul.f32 %v1397, %v1500
      %v1782 = vmul.f32 %v1398, %v1505
      %v1783 = vmul.f32 %v1399, %v1510
      %v1784 = vmul.f32 %v1400, %v1515
      %v1785 = vmul.f32 %v1401, %v1520
      %v1786 = vmul.f32 %v1402, %v1525
      %v1787 = vmul.f32 %v1403, %v1530
      %v1788 = vmul.f32 %v1404, %v1535
      %v1789 = vmul.f32 %v1405, %v1540
      %v1790 = vmul.f32 %v1406, %v1545
      %v1791 = vmul.f32 %v1407, %v1550
      %v1792 = vmul.f32 %v1408, %v1555
      %v1793 = vmul.f32 %v1409, %v1560
      %v1794 = vmul.f32 %v1410, %v1565
      %v1795 = vmul.f32 %v1411, %v1570
      %v1796 = vmul.f32 %v1412, %v1575
      %v1797 = vmul.f32 %v1413, %v1580
      %v1798 = vmul.f32 %v1414, %v1585
      %v1799 = vmul.f32 %v1415, %v1590
      %v1800 = vmul.f32 %v1416, %v1595
      %v1801 = vmul.f32 %v1417, %v1600
      %v1802 = vmul.f32 %v1418, %v1605
      %v1803 = vmul.f32 %v1419, %v1610
      %v1804 = vmul.f32 %v1420, %v1615
      %v1805 = vmul.f32 %v1421, %v1620
      %v1806 = vmul.f32 %v1422, %v1625
      %v1807 = vmul.f32 %v1423, %v1630
      %v1808 = vmul.f32 %v1424, %v1635
      %v1809 = vmul.f32 %v1425, %v1640
      %v1810 = vmul.f32 %v1426, %v1645
      %v1811 = vmul.f32 %v1427, %v1650
      %v1812 = vmul.f32 %v1428, %v1655
      %v1813 = vmul.f32 %v1429, %v1660
      %v1814 = vmul.f32 %v1430, %v1665
      %v1815 = vmul.f32 %v1431, %v1670
      %v1816 = vmul.f32 %v1432, %v1675
      %v1817 = vmul.f32 %v1433, %v1680
      %v1818 = vmul.f32 %v1434, %v1685
      %v1819 = vmul.f32 %v1435, %v1690
      %v1820 = vmul.f32 %v1436, %v1695
      %v1821 = vmul.f32 %v1437, %v1700
      %v1822 = vmul.f32 %v1438, %v1705
      %v1823 = vmul.f32 %v1439, %v1710
      %v1824 = vmul.f32 %v1440, %v1715
      %v1825 = vmul.f32 %v1441, %v1720
      %v1826 = vmul.f32 %v1442, %v1725
      %v1827 = vmul.f32 %v1443, %v1730
      %v1828 = vmul.f32 %v1444, %v1735
      %v1829 = vmul.f32 %v1445, %v1740
      %v1830 = vmul.f32 %v1446, %v1745
      %v1831 = vmul.f32 %v1447, %v1750
      %v1832 = vmul.f32 %v1448, %v1755
      %v1833 = vmul.f32 %v1449, %v1760
      %v1834 = vmul.f32 %v1450, %v1765
      %v1835 = vmul.f32 %v1451, %v1770
      %v1836 = vpack.c.bf16 %v1772, %v1772
      %v1837 = vpack.c.bf16 %v1773, %v1773
      %v1838 = vpack.c.bf16 %v1774, %v1774
      %v1839 = vpack.c.bf16 %v1775, %v1775
      %v1840 = vpack.c.bf16 %v1776, %v1776
      %v1841 = vpack.c.bf16 %v1777, %v1777
      %v1842 = vpack.c.bf16 %v1778, %v1778
      %v1843 = vpack.c.bf16 %v1779, %v1779
      %v1844 = vpack.c.bf16 %v1780, %v1780
      %v1845 = vpack.c.bf16 %v1781, %v1781
      %v1846 = vpack.c.bf16 %v1782, %v1782
      %v1847 = vpack.c.bf16 %v1783, %v1783
      %v1848 = vpack.c.bf16 %v1784, %v1784
      %v1849 = vpack.c.bf16 %v1785, %v1785
      %v1850 = vpack.c.bf16 %v1786, %v1786
      %v1851 = vpack.c.bf16 %v1787, %v1787
      %v1852 = vpack.c.bf16 %v1788, %v1788
      %v1853 = vpack.c.bf16 %v1789, %v1789
      %v1854 = vpack.c.bf16 %v1790, %v1790
      %v1855 = vpack.c.bf16 %v1791, %v1791
      %v1856 = vpack.c.bf16 %v1792, %v1792
      %v1857 = vpack.c.bf16 %v1793, %v1793
      %v1858 = vpack.c.bf16 %v1794, %v1794
      %v1859 = vpack.c.bf16 %v1795, %v1795
      %v1860 = vpack.c.bf16 %v1796, %v1796
      %v1861 = vpack.c.bf16 %v1797, %v1797
      %v1862 = vpack.c.bf16 %v1798, %v1798
      %v1863 = vpack.c.bf16 %v1799, %v1799
      %v1864 = vpack.c.bf16 %v1800, %v1800
      %v1865 = vpack.c.bf16 %v1801, %v1801
      %v1866 = vpack.c.bf16 %v1802, %v1802
      %v1867 = vpack.c.bf16 %v1803, %v1803
      %v1868 = vpack.c.bf16 %v1804, %v1804
      %v1869 = vpack.c.bf16 %v1805, %v1805
      %v1870 = vpack.c.bf16 %v1806, %v1806
      %v1871 = vpack.c.bf16 %v1807, %v1807
      %v1872 = vpack.c.bf16 %v1808, %v1808
      %v1873 = vpack.c.bf16 %v1809, %v1809
      %v1874 = vpack.c.bf16 %v1810, %v1810
      %v1875 = vpack.c.bf16 %v1811, %v1811
      %v1876 = vpack.c.bf16 %v1812, %v1812
      %v1877 = vpack.c.bf16 %v1813, %v1813
      %v1878 = vpack.c.bf16 %v1814, %v1814
      %v1879 = vpack.c.bf16 %v1815, %v1815
      %v1880 = vpack.c.bf16 %v1816, %v1816
      %v1881 = vpack.c.bf16 %v1817, %v1817
      %v1882 = vpack.c.bf16 %v1818, %v1818
      %v1883 = vpack.c.bf16 %v1819, %v1819
      %v1884 = vpack.c.bf16 %v1820, %v1820
      %v1885 = vpack.c.bf16 %v1821, %v1821
      %v1886 = vpack.c.bf16 %v1822, %v1822
      %v1887 = vpack.c.bf16 %v1823, %v1823
      %v1888 = vpack.c.bf16 %v1824, %v1824
      %v1889 = vpack.c.bf16 %v1825, %v1825
      %v1890 = vpack.c.bf16 %v1826, %v1826
      %v1891 = vpack.c.bf16 %v1827, %v1827
      %v1892 = vpack.c.bf16 %v1828, %v1828
      %v1893 = vpack.c.bf16 %v1829, %v1829
      %v1894 = vpack.c.bf16 %v1830, %v1830
      %v1895 = vpack.c.bf16 %v1831, %v1831
      %v1896 = vpack.c.bf16 %v1832, %v1832
      %v1897 = vpack.c.bf16 %v1833, %v1833
      %v1898 = vpack.c.bf16 %v1834, %v1834
      %v1899 = vpack.c.bf16 %v1835, %v1835
      %vm1900 = vcmask 27648
      %1901 = vst.msk [vmem:[%s364] sm:$0xf] %vm1900, %v1836
      %1902 = vst.msk [vmem:[%s364 + $0x4] sm:$0xf] %vm1900, %v1837
      %1903 = vst.msk [vmem:[%s364 + $0x8] sm:$0xf] %vm1900, %v1838
      %1904 = vst.msk [vmem:[%s364 + $0xc] sm:$0xf] %vm1900, %v1839
      %1905 = vst.msk [vmem:[%s364 + $0x10] sm:$0xf] %vm1900, %v1840
      %1906 = vst.msk [vmem:[%s364 + $0x14] sm:$0xf] %vm1900, %v1841
      %1907 = vst.msk [vmem:[%s364 + $0x18] sm:$0xf] %vm1900, %v1842
      %1908 = vst.msk [vmem:[%s364 + $0x1c] sm:$0xf] %vm1900, %v1843
      %1909 = vst.msk [vmem:[%s364 + $0x20] sm:$0xf] %vm1900, %v1844
      %1910 = vst.msk [vmem:[%s364 + $0x24] sm:$0xf] %vm1900, %v1845
      %1911 = vst.msk [vmem:[%s364 + $0x28] sm:$0xf] %vm1900, %v1846
      %1912 = vst.msk [vmem:[%s364 + $0x2c] sm:$0xf] %vm1900, %v1847
      %1913 = vst.msk [vmem:[%s364 + $0x30] sm:$0xf] %vm1900, %v1848
      %1914 = vst.msk [vmem:[%s364 + $0x34] sm:$0xf] %vm1900, %v1849
      %1915 = vst.msk [vmem:[%s364 + $0x38] sm:$0xf] %vm1900, %v1850
      %1916 = vst.msk [vmem:[%s364 + $0x3c] sm:$0xf] %vm1900, %v1851
      %1917 = vst.msk [vmem:[%s364 + $0x40] sm:$0xf] %vm1900, %v1852
      %1918 = vst.msk [vmem:[%s364 + $0x44] sm:$0xf] %vm1900, %v1853
      %1919 = vst.msk [vmem:[%s364 + $0x48] sm:$0xf] %vm1900, %v1854
      %1920 = vst.msk [vmem:[%s364 + $0x4c] sm:$0xf] %vm1900, %v1855
      %1921 = vst.msk [vmem:[%s364 + $0x50] sm:$0xf] %vm1900, %v1856
      %1922 = vst.msk [vmem:[%s364 + $0x54] sm:$0xf] %vm1900, %v1857
      %1923 = vst.msk [vmem:[%s364 + $0x58] sm:$0xf] %vm1900, %v1858
      %1924 = vst.msk [vmem:[%s364 + $0x5c] sm:$0xf] %vm1900, %v1859
      %1925 = vst.msk [vmem:[%s364 + $0x60] sm:$0xf] %vm1900, %v1860
      %1926 = vst.msk [vmem:[%s364 + $0x64] sm:$0xf] %vm1900, %v1861
      %1927 = vst.msk [vmem:[%s364 + $0x68] sm:$0xf] %vm1900, %v1862
      %1928 = vst.msk [vmem:[%s364 + $0x6c] sm:$0xf] %vm1900, %v1863
      %1929 = vst.msk [vmem:[%s364 + $0x70] sm:$0xf] %vm1900, %v1864
      %1930 = vst.msk [vmem:[%s364 + $0x74] sm:$0xf] %vm1900, %v1865
      %1931 = vst.msk [vmem:[%s364 + $0x78] sm:$0xf] %vm1900, %v1866
      %1932 = vst.msk [vmem:[%s364 + $0x7c] sm:$0xf] %vm1900, %v1867
      %1933 = vst.msk [vmem:[%s364 + $0x80] sm:$0xf] %vm1900, %v1868
      %1934 = vst.msk [vmem:[%s364 + $0x84] sm:$0xf] %vm1900, %v1869
      %1935 = vst.msk [vmem:[%s364 + $0x88] sm:$0xf] %vm1900, %v1870
      %1936 = vst.msk [vmem:[%s364 + $0x8c] sm:$0xf] %vm1900, %v1871
      %1937 = vst.msk [vmem:[%s364 + $0x90] sm:$0xf] %vm1900, %v1872
      %1938 = vst.msk [vmem:[%s364 + $0x94] sm:$0xf] %vm1900, %v1873
      %1939 = vst.msk [vmem:[%s364 + $0x98] sm:$0xf] %vm1900, %v1874
      %1940 = vst.msk [vmem:[%s364 + $0x9c] sm:$0xf] %vm1900, %v1875
      %1941 = vst.msk [vmem:[%s364 + $0xa0] sm:$0xf] %vm1900, %v1876
      %1942 = vst.msk [vmem:[%s364 + $0xa4] sm:$0xf] %vm1900, %v1877
      %1943 = vst.msk [vmem:[%s364 + $0xa8] sm:$0xf] %vm1900, %v1878
      %1944 = vst.msk [vmem:[%s364 + $0xac] sm:$0xf] %vm1900, %v1879
      %1945 = vst.msk [vmem:[%s364 + $0xb0] sm:$0xf] %vm1900, %v1880
      %1946 = vst.msk [vmem:[%s364 + $0xb4] sm:$0xf] %vm1900, %v1881
      %1947 = vst.msk [vmem:[%s364 + $0xb8] sm:$0xf] %vm1900, %v1882
      %1948 = vst.msk [vmem:[%s364 + $0xbc] sm:$0xf] %vm1900, %v1883
      %1949 = vst.msk [vmem:[%s364 + $0xc0] sm:$0xf] %vm1900, %v1884
      %1950 = vst.msk [vmem:[%s364 + $0xc4] sm:$0xf] %vm1900, %v1885
      %1951 = vst.msk [vmem:[%s364 + $0xc8] sm:$0xf] %vm1900, %v1886
      %1952 = vst.msk [vmem:[%s364 + $0xcc] sm:$0xf] %vm1900, %v1887
      %1953 = vst.msk [vmem:[%s364 + $0xd0] sm:$0xf] %vm1900, %v1888
      %1954 = vst.msk [vmem:[%s364 + $0xd4] sm:$0xf] %vm1900, %v1889
      %1955 = vst.msk [vmem:[%s364 + $0xd8] sm:$0xf] %vm1900, %v1890
      %1956 = vst.msk [vmem:[%s364 + $0xdc] sm:$0xf] %vm1900, %v1891
      %1957 = vst.msk [vmem:[%s364 + $0xe0] sm:$0xf] %vm1900, %v1892
      %1958 = vst.msk [vmem:[%s364 + $0xe4] sm:$0xf] %vm1900, %v1893
      %1959 = vst.msk [vmem:[%s364 + $0xe8] sm:$0xf] %vm1900, %v1894
      %1960 = vst.msk [vmem:[%s364 + $0xec] sm:$0xf] %vm1900, %v1895
      %1961 = vst.msk [vmem:[%s364 + $0xf0] sm:$0xf] %vm1900, %v1896
      %1962 = vst.msk [vmem:[%s364 + $0xf4] sm:$0xf] %vm1900, %v1897
      %1963 = vst.msk [vmem:[%s364 + $0xf8] sm:$0xf] %vm1900, %v1898
      %1964 = vst.msk [vmem:[%s364 + $0xfc] sm:$0xf] %vm1900, %v1899
      %v1965 = vld [vmem:[%s5] sm:$0x3]
      %v1967 = vsel %vm759, %v1965, 0
      %1969 = vmatpush.bf16.msra.mxu0 0
      %1970 = vmatpush.bf16.msra.mxu0 0
      %1971 = vmatpush.bf16.msra.mxu0 0
      %1972 = vmatpush.bf16.msra.mxu0 0
      %1973 = vmatpush.bf16.msra.mxu0 0
      %1974 = vmatpush.bf16.msra.mxu0 0
      %1975 = vmatpush.bf16.msra.mxu0 0
      %1976 = vmatpush.bf16.msra.mxu0 %v1967
      %1977 = vmatmul.bf16.gmra.mxu0 %v664
      %v1978 = vpop.f32.mrf.mxu0
      %v1979 = vadd.f32 0.0, %v1978
      %v1980 = vpop.f32.mrf.mxu0
      %v1981 = vadd.f32 0.0, %v1980
      %1982 = vmatmul.bf16.gmra.mxu0 %v667
      %v1983 = vpop.f32.mrf.mxu0
      %v1984 = vadd.f32 0.0, %v1983
      %v1985 = vpop.f32.mrf.mxu0
      %v1986 = vadd.f32 0.0, %v1985
      %1987 = vmatmul.bf16.gmra.mxu0 %v670
      %v1988 = vpop.f32.mrf.mxu0
      %v1989 = vadd.f32 0.0, %v1988
      %v1990 = vpop.f32.mrf.mxu0
      %v1991 = vadd.f32 0.0, %v1990
      %1992 = vmatmul.bf16.gmra.mxu0 %v673
      %v1993 = vpop.f32.mrf.mxu0
      %v1994 = vadd.f32 0.0, %v1993
      %v1995 = vpop.f32.mrf.mxu0
      %v1996 = vadd.f32 0.0, %v1995
      %1997 = vmatmul.bf16.gmra.mxu0 %v676
      %v1998 = vpop.f32.mrf.mxu0
      %v1999 = vadd.f32 0.0, %v1998
      %v2000 = vpop.f32.mrf.mxu0
      %v2001 = vadd.f32 0.0, %v2000
      %2002 = vmatmul.bf16.gmra.mxu0 %v679
      %v2003 = vpop.f32.mrf.mxu0
      %v2004 = vadd.f32 0.0, %v2003
      %v2005 = vpop.f32.mrf.mxu0
      %v2006 = vadd.f32 0.0, %v2005
      %2007 = vmatmul.bf16.gmra.mxu0 %v682
      %v2008 = vpop.f32.mrf.mxu0
      %v2009 = vadd.f32 0.0, %v2008
      %v2010 = vpop.f32.mrf.mxu0
      %v2011 = vadd.f32 0.0, %v2010
      %2012 = vmatmul.bf16.gmra.mxu0 %v685
      %v2013 = vpop.f32.mrf.mxu0
      %v2014 = vadd.f32 0.0, %v2013
      %v2015 = vpop.f32.mrf.mxu0
      %v2016 = vadd.f32 0.0, %v2015
      %2017 = vmatmul.bf16.gmra.mxu0 %v688
      %v2018 = vpop.f32.mrf.mxu0
      %v2019 = vadd.f32 0.0, %v2018
      %v2020 = vpop.f32.mrf.mxu0
      %v2021 = vadd.f32 0.0, %v2020
      %2022 = vmatmul.bf16.gmra.mxu0 %v691
      %v2023 = vpop.f32.mrf.mxu0
      %v2024 = vadd.f32 0.0, %v2023
      %v2025 = vpop.f32.mrf.mxu0
      %v2026 = vadd.f32 0.0, %v2025
      %2027 = vmatmul.bf16.gmra.mxu0 %v694
      %v2028 = vpop.f32.mrf.mxu0
      %v2029 = vadd.f32 0.0, %v2028
      %v2030 = vpop.f32.mrf.mxu0
      %v2031 = vadd.f32 0.0, %v2030
      %2032 = vmatmul.bf16.gmra.mxu0 %v697
      %v2033 = vpop.f32.mrf.mxu0
      %v2034 = vadd.f32 0.0, %v2033
      %v2035 = vpop.f32.mrf.mxu0
      %v2036 = vadd.f32 0.0, %v2035
      %2037 = vmatmul.bf16.gmra.mxu0 %v700
      %v2038 = vpop.f32.mrf.mxu0
      %v2039 = vadd.f32 0.0, %v2038
      %v2040 = vpop.f32.mrf.mxu0
      %v2041 = vadd.f32 0.0, %v2040
      %2042 = vmatmul.bf16.gmra.mxu0 %v703
      %v2043 = vpop.f32.mrf.mxu0
      %v2044 = vadd.f32 0.0, %v2043
      %v2045 = vpop.f32.mrf.mxu0
      %v2046 = vadd.f32 0.0, %v2045
      %2047 = vmatmul.bf16.gmra.mxu0 %v706
      %v2048 = vpop.f32.mrf.mxu0
      %v2049 = vadd.f32 0.0, %v2048
      %v2050 = vpop.f32.mrf.mxu0
      %v2051 = vadd.f32 0.0, %v2050
      %2052 = vmatmul.bf16.gmra.mxu0 %v709
      %v2053 = vpop.f32.mrf.mxu0
      %v2054 = vadd.f32 0.0, %v2053
      %v2055 = vpop.f32.mrf.mxu0
      %v2056 = vadd.f32 0.0, %v2055
      %2057 = vmatmul.bf16.gmra.mxu0 %v712
      %v2058 = vpop.f32.mrf.mxu0
      %v2059 = vadd.f32 0.0, %v2058
      %v2060 = vpop.f32.mrf.mxu0
      %v2061 = vadd.f32 0.0, %v2060
      %2062 = vmatmul.bf16.gmra.mxu0 %v715
      %v2063 = vpop.f32.mrf.mxu0
      %v2064 = vadd.f32 0.0, %v2063
      %v2065 = vpop.f32.mrf.mxu0
      %v2066 = vadd.f32 0.0, %v2065
      %2067 = vmatmul.bf16.gmra.mxu0 %v718
      %v2068 = vpop.f32.mrf.mxu0
      %v2069 = vadd.f32 0.0, %v2068
      %v2070 = vpop.f32.mrf.mxu0
      %v2071 = vadd.f32 0.0, %v2070
      %2072 = vmatmul.bf16.gmra.mxu0 %v721
      %v2073 = vpop.f32.mrf.mxu0
      %v2074 = vadd.f32 0.0, %v2073
      %v2075 = vpop.f32.mrf.mxu0
      %v2076 = vadd.f32 0.0, %v2075
      %2077 = vmatmul.bf16.gmra.mxu0 %v724
      %v2078 = vpop.f32.mrf.mxu0
      %v2079 = vadd.f32 0.0, %v2078
      %v2080 = vpop.f32.mrf.mxu0
      %v2081 = vadd.f32 0.0, %v2080
      %2082 = vmatmul.bf16.gmra.mxu0 %v727
      %v2083 = vpop.f32.mrf.mxu0
      %v2084 = vadd.f32 0.0, %v2083
      %v2085 = vpop.f32.mrf.mxu0
      %v2086 = vadd.f32 0.0, %v2085
      %2087 = vmatmul.bf16.gmra.mxu0 %v730
      %v2088 = vpop.f32.mrf.mxu0
      %v2089 = vadd.f32 0.0, %v2088
      %v2090 = vpop.f32.mrf.mxu0
      %v2091 = vadd.f32 0.0, %v2090
      %2092 = vmatmul.bf16.gmra.mxu0 %v733
      %v2093 = vpop.f32.mrf.mxu0
      %v2094 = vadd.f32 0.0, %v2093
      %v2095 = vpop.f32.mrf.mxu0
      %v2096 = vadd.f32 0.0, %v2095
      %2097 = vmatmul.bf16.gmra.mxu0 %v736
      %v2098 = vpop.f32.mrf.mxu0
      %v2099 = vadd.f32 0.0, %v2098
      %v2100 = vpop.f32.mrf.mxu0
      %v2101 = vadd.f32 0.0, %v2100
      %2102 = vmatmul.bf16.gmra.mxu0 %v739
      %v2103 = vpop.f32.mrf.mxu0
      %v2104 = vadd.f32 0.0, %v2103
      %v2105 = vpop.f32.mrf.mxu0
      %v2106 = vadd.f32 0.0, %v2105
      %2107 = vmatmul.bf16.gmra.mxu0 %v742
      %v2108 = vpop.f32.mrf.mxu0
      %v2109 = vadd.f32 0.0, %v2108
      %v2110 = vpop.f32.mrf.mxu0
      %v2111 = vadd.f32 0.0, %v2110
      %2112 = vmatmul.bf16.gmra.mxu0 %v745
      %v2113 = vpop.f32.mrf.mxu0
      %v2114 = vadd.f32 0.0, %v2113
      %v2115 = vpop.f32.mrf.mxu0
      %v2116 = vadd.f32 0.0, %v2115
      %2117 = vmatmul.bf16.gmra.mxu0 %v748
      %v2118 = vpop.f32.mrf.mxu0
      %v2119 = vadd.f32 0.0, %v2118
      %v2120 = vpop.f32.mrf.mxu0
      %v2121 = vadd.f32 0.0, %v2120
      %2122 = vmatmul.bf16.gmra.mxu0 %v751
      %v2123 = vpop.f32.mrf.mxu0
      %v2124 = vadd.f32 0.0, %v2123
      %v2125 = vpop.f32.mrf.mxu0
      %v2126 = vadd.f32 0.0, %v2125
      %2127 = vmatmul.bf16.gmra.mxu0 %v754
      %v2128 = vpop.f32.mrf.mxu0
      %v2129 = vadd.f32 0.0, %v2128
      %v2130 = vpop.f32.mrf.mxu0
      %v2131 = vadd.f32 0.0, %v2130
      %2132 = vmatmul.bf16.gmra.mxu0 %v757
      %v2133 = vpop.f32.mrf.mxu0
      %v2134 = vadd.f32 0.0, %v2133
      %v2135 = vpop.f32.mrf.mxu0
      %v2136 = vadd.f32 0.0, %v2135
      %2137 = vdwg.mxu0
      %v2138 = vld [vmem:[%s6] sm:$0x1]
      %v2140 = vperm.slane %v2138, 0
      %v2142 = vmul.f32 %v1979, %v2140
      %v2143 = vmul.f32 %v1981, %v2140
      %v2144 = vmul.f32 %v1984, %v2140
      %v2145 = vmul.f32 %v1986, %v2140
      %v2146 = vmul.f32 %v1989, %v2140
      %v2147 = vmul.f32 %v1991, %v2140
      %v2148 = vmul.f32 %v1994, %v2140
      %v2149 = vmul.f32 %v1996, %v2140
      %v2150 = vmul.f32 %v1999, %v2140
      %v2151 = vmul.f32 %v2001, %v2140
      %v2152 = vmul.f32 %v2004, %v2140
      %v2153 = vmul.f32 %v2006, %v2140
      %v2154 = vmul.f32 %v2009, %v2140
      %v2155 = vmul.f32 %v2011, %v2140
      %v2156 = vmul.f32 %v2014, %v2140
      %v2157 = vmul.f32 %v2016, %v2140
      %v2158 = vmul.f32 %v2019, %v2140
      %v2159 = vmul.f32 %v2021, %v2140
      %v2160 = vmul.f32 %v2024, %v2140
      %v2161 = vmul.f32 %v2026, %v2140
      %v2162 = vmul.f32 %v2029, %v2140
      %v2163 = vmul.f32 %v2031, %v2140
      %v2164 = vmul.f32 %v2034, %v2140
      %v2165 = vmul.f32 %v2036, %v2140
      %v2166 = vmul.f32 %v2039, %v2140
      %v2167 = vmul.f32 %v2041, %v2140
      %v2168 = vmul.f32 %v2044, %v2140
      %v2169 = vmul.f32 %v2046, %v2140
      %v2170 = vmul.f32 %v2049, %v2140
      %v2171 = vmul.f32 %v2051, %v2140
      %v2172 = vmul.f32 %v2054, %v2140
      %v2173 = vmul.f32 %v2056, %v2140
      %v2174 = vmul.f32 %v2059, %v2140
      %v2175 = vmul.f32 %v2061, %v2140
      %v2176 = vmul.f32 %v2064, %v2140
      %v2177 = vmul.f32 %v2066, %v2140
      %v2178 = vmul.f32 %v2069, %v2140
      %v2179 = vmul.f32 %v2071, %v2140
      %v2180 = vmul.f32 %v2074, %v2140
      %v2181 = vmul.f32 %v2076, %v2140
      %v2182 = vmul.f32 %v2079, %v2140
      %v2183 = vmul.f32 %v2081, %v2140
      %v2184 = vmul.f32 %v2084, %v2140
      %v2185 = vmul.f32 %v2086, %v2140
      %v2186 = vmul.f32 %v2089, %v2140
      %v2187 = vmul.f32 %v2091, %v2140
      %v2188 = vmul.f32 %v2094, %v2140
      %v2189 = vmul.f32 %v2096, %v2140
      %v2190 = vmul.f32 %v2099, %v2140
      %v2191 = vmul.f32 %v2101, %v2140
      %v2192 = vmul.f32 %v2104, %v2140
      %v2193 = vmul.f32 %v2106, %v2140
      %v2194 = vmul.f32 %v2109, %v2140
      %v2195 = vmul.f32 %v2111, %v2140
      %v2196 = vmul.f32 %v2114, %v2140
      %v2197 = vmul.f32 %v2116, %v2140
      %v2198 = vmul.f32 %v2119, %v2140
      %v2199 = vmul.f32 %v2121, %v2140
      %v2200 = vmul.f32 %v2124, %v2140
      %v2201 = vmul.f32 %v2126, %v2140
      %v2202 = vmul.f32 %v2129, %v2140
      %v2203 = vmul.f32 %v2131, %v2140
      %v2204 = vmul.f32 %v2134, %v2140
      %v2205 = vmul.f32 %v2136, %v2140
      %v2206 = vld [vmem:[%s7] sm:$0x1]
      %v2208 = vperm.slane %v2206, 0
      %v2210 = vadd.f32 %v2142, %v2208
      %v2211 = vadd.f32 %v2143, %v2208
      %v2212 = vadd.f32 %v2144, %v2208
      %v2213 = vadd.f32 %v2145, %v2208
      %v2214 = vadd.f32 %v2146, %v2208
      %v2215 = vadd.f32 %v2147, %v2208
      %v2216 = vadd.f32 %v2148, %v2208
      %v2217 = vadd.f32 %v2149, %v2208
      %v2218 = vadd.f32 %v2150, %v2208
      %v2219 = vadd.f32 %v2151, %v2208
      %v2220 = vadd.f32 %v2152, %v2208
      %v2221 = vadd.f32 %v2153, %v2208
      %v2222 = vadd.f32 %v2154, %v2208
      %v2223 = vadd.f32 %v2155, %v2208
      %v2224 = vadd.f32 %v2156, %v2208
      %v2225 = vadd.f32 %v2157, %v2208
      %v2226 = vadd.f32 %v2158, %v2208
      %v2227 = vadd.f32 %v2159, %v2208
      %v2228 = vadd.f32 %v2160, %v2208
      %v2229 = vadd.f32 %v2161, %v2208
      %v2230 = vadd.f32 %v2162, %v2208
      %v2231 = vadd.f32 %v2163, %v2208
      %v2232 = vadd.f32 %v2164, %v2208
      %v2233 = vadd.f32 %v2165, %v2208
      %v2234 = vadd.f32 %v2166, %v2208
      %v2235 = vadd.f32 %v2167, %v2208
      %v2236 = vadd.f32 %v2168, %v2208
      %v2237 = vadd.f32 %v2169, %v2208
      %v2238 = vadd.f32 %v2170, %v2208
      %v2239 = vadd.f32 %v2171, %v2208
      %v2240 = vadd.f32 %v2172, %v2208
      %v2241 = vadd.f32 %v2173, %v2208
      %v2242 = vadd.f32 %v2174, %v2208
      %v2243 = vadd.f32 %v2175, %v2208
      %v2244 = vadd.f32 %v2176, %v2208
      %v2245 = vadd.f32 %v2177, %v2208
      %v2246 = vadd.f32 %v2178, %v2208
      %v2247 = vadd.f32 %v2179, %v2208
      %v2248 = vadd.f32 %v2180, %v2208
      %v2249 = vadd.f32 %v2181, %v2208
      %v2250 = vadd.f32 %v2182, %v2208
      %v2251 = vadd.f32 %v2183, %v2208
      %v2252 = vadd.f32 %v2184, %v2208
      %v2253 = vadd.f32 %v2185, %v2208
      %v2254 = vadd.f32 %v2186, %v2208
      %v2255 = vadd.f32 %v2187, %v2208
      %v2256 = vadd.f32 %v2188, %v2208
      %v2257 = vadd.f32 %v2189, %v2208
      %v2258 = vadd.f32 %v2190, %v2208
      %v2259 = vadd.f32 %v2191, %v2208
      %v2260 = vadd.f32 %v2192, %v2208
      %v2261 = vadd.f32 %v2193, %v2208
      %v2262 = vadd.f32 %v2194, %v2208
      %v2263 = vadd.f32 %v2195, %v2208
      %v2264 = vadd.f32 %v2196, %v2208
      %v2265 = vadd.f32 %v2197, %v2208
      %v2266 = vadd.f32 %v2198, %v2208
      %v2267 = vadd.f32 %v2199, %v2208
      %v2268 = vadd.f32 %v2200, %v2208
      %v2269 = vadd.f32 %v2201, %v2208
      %v2270 = vadd.f32 %v2202, %v2208
      %v2271 = vadd.f32 %v2203, %v2208
      %v2272 = vadd.f32 %v2204, %v2208
      %v2273 = vadd.f32 %v2205, %v2208
      %v2274 = vsub.f32 0.0, %v2210
      %v2275 = vsub.f32 0.0, %v2211
      %v2276 = vsub.f32 0.0, %v2212
      %v2277 = vsub.f32 0.0, %v2213
      %v2278 = vsub.f32 0.0, %v2214
      %v2279 = vsub.f32 0.0, %v2215
      %v2280 = vsub.f32 0.0, %v2216
      %v2281 = vsub.f32 0.0, %v2217
      %v2282 = vsub.f32 0.0, %v2218
      %v2283 = vsub.f32 0.0, %v2219
      %v2284 = vsub.f32 0.0, %v2220
      %v2285 = vsub.f32 0.0, %v2221
      %v2286 = vsub.f32 0.0, %v2222
      %v2287 = vsub.f32 0.0, %v2223
      %v2288 = vsub.f32 0.0, %v2224
      %v2289 = vsub.f32 0.0, %v2225
      %v2290 = vsub.f32 0.0, %v2226
      %v2291 = vsub.f32 0.0, %v2227
      %v2292 = vsub.f32 0.0, %v2228
      %v2293 = vsub.f32 0.0, %v2229
      %v2294 = vsub.f32 0.0, %v2230
      %v2295 = vsub.f32 0.0, %v2231
      %v2296 = vsub.f32 0.0, %v2232
      %v2297 = vsub.f32 0.0, %v2233
      %v2298 = vsub.f32 0.0, %v2234
      %v2299 = vsub.f32 0.0, %v2235
      %v2300 = vsub.f32 0.0, %v2236
      %v2301 = vsub.f32 0.0, %v2237
      %v2302 = vsub.f32 0.0, %v2238
      %v2303 = vsub.f32 0.0, %v2239
      %v2304 = vsub.f32 0.0, %v2240
      %v2305 = vsub.f32 0.0, %v2241
      %v2306 = vsub.f32 0.0, %v2242
      %v2307 = vsub.f32 0.0, %v2243
      %v2308 = vsub.f32 0.0, %v2244
      %v2309 = vsub.f32 0.0, %v2245
      %v2310 = vsub.f32 0.0, %v2246
      %v2311 = vsub.f32 0.0, %v2247
      %v2312 = vsub.f32 0.0, %v2248
      %v2313 = vsub.f32 0.0, %v2249
      %v2314 = vsub.f32 0.0, %v2250
      %v2315 = vsub.f32 0.0, %v2251
      %v2316 = vsub.f32 0.0, %v2252
      %v2317 = vsub.f32 0.0, %v2253
      %v2318 = vsub.f32 0.0, %v2254
      %v2319 = vsub.f32 0.0, %v2255
      %v2320 = vsub.f32 0.0, %v2256
      %v2321 = vsub.f32 0.0, %v2257
      %v2322 = vsub.f32 0.0, %v2258
      %v2323 = vsub.f32 0.0, %v2259
      %v2324 = vsub.f32 0.0, %v2260
      %v2325 = vsub.f32 0.0, %v2261
      %v2326 = vsub.f32 0.0, %v2262
      %v2327 = vsub.f32 0.0, %v2263
      %v2328 = vsub.f32 0.0, %v2264
      %v2329 = vsub.f32 0.0, %v2265
      %v2330 = vsub.f32 0.0, %v2266
      %v2331 = vsub.f32 0.0, %v2267
      %v2332 = vsub.f32 0.0, %v2268
      %v2333 = vsub.f32 0.0, %v2269
      %v2334 = vsub.f32 0.0, %v2270
      %v2335 = vsub.f32 0.0, %v2271
      %v2336 = vsub.f32 0.0, %v2272
      %v2337 = vsub.f32 0.0, %v2273
      %v2338 = vmul.f32 %v2274, 1.442695
      %v2339 = vpow.pop %v2338
      %v2340 = vmul.f32 %v2275, 1.442695
      %v2341 = vpow.pop %v2340
      %v2342 = vmul.f32 %v2276, 1.442695
      %v2343 = vpow.pop %v2342
      %v2344 = vmul.f32 %v2277, 1.442695
      %v2345 = vpow.pop %v2344
      %v2346 = vmul.f32 %v2278, 1.442695
      %v2347 = vpow.pop %v2346
      %v2348 = vmul.f32 %v2279, 1.442695
      %v2349 = vpow.pop %v2348
      %v2350 = vmul.f32 %v2280, 1.442695
      %v2351 = vpow.pop %v2350
      %v2352 = vmul.f32 %v2281, 1.442695
      %v2353 = vpow.pop %v2352
      %v2354 = vmul.f32 %v2282, 1.442695
      %v2355 = vpow.pop %v2354
      %v2356 = vmul.f32 %v2283, 1.442695
      %v2357 = vpow.pop %v2356
      %v2358 = vmul.f32 %v2284, 1.442695
      %v2359 = vpow.pop %v2358
      %v2360 = vmul.f32 %v2285, 1.442695
      %v2361 = vpow.pop %v2360
      %v2362 = vmul.f32 %v2286, 1.442695
      %v2363 = vpow.pop %v2362
      %v2364 = vmul.f32 %v2287, 1.442695
      %v2365 = vpow.pop %v2364
      %v2366 = vmul.f32 %v2288, 1.442695
      %v2367 = vpow.pop %v2366
      %v2368 = vmul.f32 %v2289, 1.442695
      %v2369 = vpow.pop %v2368
      %v2370 = vmul.f32 %v2290, 1.442695
      %v2371 = vpow.pop %v2370
      %v2372 = vmul.f32 %v2291, 1.442695
      %v2373 = vpow.pop %v2372
      %v2374 = vmul.f32 %v2292, 1.442695
      %v2375 = vpow.pop %v2374
      %v2376 = vmul.f32 %v2293, 1.442695
      %v2377 = vpow.pop %v2376
      %v2378 = vmul.f32 %v2294, 1.442695
      %v2379 = vpow.pop %v2378
      %v2380 = vmul.f32 %v2295, 1.442695
      %v2381 = vpow.pop %v2380
      %v2382 = vmul.f32 %v2296, 1.442695
      %v2383 = vpow.pop %v2382
      %v2384 = vmul.f32 %v2297, 1.442695
      %v2385 = vpow.pop %v2384
      %v2386 = vmul.f32 %v2298, 1.442695
      %v2387 = vpow.pop %v2386
      %v2388 = vmul.f32 %v2299, 1.442695
      %v2389 = vpow.pop %v2388
      %v2390 = vmul.f32 %v2300, 1.442695
      %v2391 = vpow.pop %v2390
      %v2392 = vmul.f32 %v2301, 1.442695
      %v2393 = vpow.pop %v2392
      %v2394 = vmul.f32 %v2302, 1.442695
      %v2395 = vpow.pop %v2394
      %v2396 = vmul.f32 %v2303, 1.442695
      %v2397 = vpow.pop %v2396
      %v2398 = vmul.f32 %v2304, 1.442695
      %v2399 = vpow.pop %v2398
      %v2400 = vmul.f32 %v2305, 1.442695
      %v2401 = vpow.pop %v2400
      %v2402 = vmul.f32 %v2306, 1.442695
      %v2403 = vpow.pop %v2402
      %v2404 = vmul.f32 %v2307, 1.442695
      %v2405 = vpow.pop %v2404
      %v2406 = vmul.f32 %v2308, 1.442695
      %v2407 = vpow.pop %v2406
      %v2408 = vmul.f32 %v2309, 1.442695
      %v2409 = vpow.pop %v2408
      %v2410 = vmul.f32 %v2310, 1.442695
      %v2411 = vpow.pop %v2410
      %v2412 = vmul.f32 %v2311, 1.442695
      %v2413 = vpow.pop %v2412
      %v2414 = vmul.f32 %v2312, 1.442695
      %v2415 = vpow.pop %v2414
      %v2416 = vmul.f32 %v2313, 1.442695
      %v2417 = vpow.pop %v2416
      %v2418 = vmul.f32 %v2314, 1.442695
      %v2419 = vpow.pop %v2418
      %v2420 = vmul.f32 %v2315, 1.442695
      %v2421 = vpow.pop %v2420
      %v2422 = vmul.f32 %v2316, 1.442695
      %v2423 = vpow.pop %v2422
      %v2424 = vmul.f32 %v2317, 1.442695
      %v2425 = vpow.pop %v2424
      %v2426 = vmul.f32 %v2318, 1.442695
      %v2427 = vpow.pop %v2426
      %v2428 = vmul.f32 %v2319, 1.442695
      %v2429 = vpow.pop %v2428
      %v2430 = vmul.f32 %v2320, 1.442695
      %v2431 = vpow.pop %v2430
      %v2432 = vmul.f32 %v2321, 1.442695
      %v2433 = vpow.pop %v2432
      %v2434 = vmul.f32 %v2322, 1.442695
      %v2435 = vpow.pop %v2434
      %v2436 = vmul.f32 %v2323, 1.442695
      %v2437 = vpow.pop %v2436
      %v2438 = vmul.f32 %v2324, 1.442695
      %v2439 = vpow.pop %v2438
      %v2440 = vmul.f32 %v2325, 1.442695
      %v2441 = vpow.pop %v2440
      %v2442 = vmul.f32 %v2326, 1.442695
      %v2443 = vpow.pop %v2442
      %v2444 = vmul.f32 %v2327, 1.442695
      %v2445 = vpow.pop %v2444
      %v2446 = vmul.f32 %v2328, 1.442695
      %v2447 = vpow.pop %v2446
      %v2448 = vmul.f32 %v2329, 1.442695
      %v2449 = vpow.pop %v2448
      %v2450 = vmul.f32 %v2330, 1.442695
      %v2451 = vpow.pop %v2450
      %v2452 = vmul.f32 %v2331, 1.442695
      %v2453 = vpow.pop %v2452
      %v2454 = vmul.f32 %v2332, 1.442695
      %v2455 = vpow.pop %v2454
      %v2456 = vmul.f32 %v2333, 1.442695
      %v2457 = vpow.pop %v2456
      %v2458 = vmul.f32 %v2334, 1.442695
      %v2459 = vpow.pop %v2458
      %v2460 = vmul.f32 %v2335, 1.442695
      %v2461 = vpow.pop %v2460
      %v2462 = vmul.f32 %v2336, 1.442695
      %v2463 = vpow.pop %v2462
      %v2464 = vmul.f32 %v2337, 1.442695
      %v2465 = vpow.pop %v2464
      %v2466 = vadd.f32 %v2339, 1.0
      %v2467 = vadd.f32 %v2341, 1.0
      %v2468 = vadd.f32 %v2343, 1.0
      %v2469 = vadd.f32 %v2345, 1.0
      %v2470 = vadd.f32 %v2347, 1.0
      %v2471 = vadd.f32 %v2349, 1.0
      %v2472 = vadd.f32 %v2351, 1.0
      %v2473 = vadd.f32 %v2353, 1.0
      %v2474 = vadd.f32 %v2355, 1.0
      %v2475 = vadd.f32 %v2357, 1.0
      %v2476 = vadd.f32 %v2359, 1.0
      %v2477 = vadd.f32 %v2361, 1.0
      %v2478 = vadd.f32 %v2363, 1.0
      %v2479 = vadd.f32 %v2365, 1.0
      %v2480 = vadd.f32 %v2367, 1.0
      %v2481 = vadd.f32 %v2369, 1.0
      %v2482 = vadd.f32 %v2371, 1.0
      %v2483 = vadd.f32 %v2373, 1.0
      %v2484 = vadd.f32 %v2375, 1.0
      %v2485 = vadd.f32 %v2377, 1.0
      %v2486 = vadd.f32 %v2379, 1.0
      %v2487 = vadd.f32 %v2381, 1.0
      %v2488 = vadd.f32 %v2383, 1.0
      %v2489 = vadd.f32 %v2385, 1.0
      %v2490 = vadd.f32 %v2387, 1.0
      %v2491 = vadd.f32 %v2389, 1.0
      %v2492 = vadd.f32 %v2391, 1.0
      %v2493 = vadd.f32 %v2393, 1.0
      %v2494 = vadd.f32 %v2395, 1.0
      %v2495 = vadd.f32 %v2397, 1.0
      %v2496 = vadd.f32 %v2399, 1.0
      %v2497 = vadd.f32 %v2401, 1.0
      %v2498 = vadd.f32 %v2403, 1.0
      %v2499 = vadd.f32 %v2405, 1.0
      %v2500 = vadd.f32 %v2407, 1.0
      %v2501 = vadd.f32 %v2409, 1.0
      %v2502 = vadd.f32 %v2411, 1.0
      %v2503 = vadd.f32 %v2413, 1.0
      %v2504 = vadd.f32 %v2415, 1.0
      %v2505 = vadd.f32 %v2417, 1.0
      %v2506 = vadd.f32 %v2419, 1.0
      %v2507 = vadd.f32 %v2421, 1.0
      %v2508 = vadd.f32 %v2423, 1.0
      %v2509 = vadd.f32 %v2425, 1.0
      %v2510 = vadd.f32 %v2427, 1.0
      %v2511 = vadd.f32 %v2429, 1.0
      %v2512 = vadd.f32 %v2431, 1.0
      %v2513 = vadd.f32 %v2433, 1.0
      %v2514 = vadd.f32 %v2435, 1.0
      %v2515 = vadd.f32 %v2437, 1.0
      %v2516 = vadd.f32 %v2439, 1.0
      %v2517 = vadd.f32 %v2441, 1.0
      %v2518 = vadd.f32 %v2443, 1.0
      %v2519 = vadd.f32 %v2445, 1.0
      %v2520 = vadd.f32 %v2447, 1.0
      %v2521 = vadd.f32 %v2449, 1.0
      %v2522 = vadd.f32 %v2451, 1.0
      %v2523 = vadd.f32 %v2453, 1.0
      %v2524 = vadd.f32 %v2455, 1.0
      %v2525 = vadd.f32 %v2457, 1.0
      %v2526 = vadd.f32 %v2459, 1.0
      %v2527 = vadd.f32 %v2461, 1.0
      %v2528 = vadd.f32 %v2463, 1.0
      %v2529 = vadd.f32 %v2465, 1.0
      %v2530 = vrcp.pop %v2466
      %v2531 = vrcp.pop %v2467
      %v2532 = vrcp.pop %v2468
      %v2533 = vrcp.pop %v2469
      %v2534 = vrcp.pop %v2470
      %v2535 = vrcp.pop %v2471
      %v2536 = vrcp.pop %v2472
      %v2537 = vrcp.pop %v2473
      %v2538 = vrcp.pop %v2474
      %v2539 = vrcp.pop %v2475
      %v2540 = vrcp.pop %v2476
      %v2541 = vrcp.pop %v2477
      %v2542 = vrcp.pop %v2478
      %v2543 = vrcp.pop %v2479
      %v2544 = vrcp.pop %v2480
      %v2545 = vrcp.pop %v2481
      %v2546 = vrcp.pop %v2482
      %v2547 = vrcp.pop %v2483
      %v2548 = vrcp.pop %v2484
      %v2549 = vrcp.pop %v2485
      %v2550 = vrcp.pop %v2486
      %v2551 = vrcp.pop %v2487
      %v2552 = vrcp.pop %v2488
      %v2553 = vrcp.pop %v2489
      %v2554 = vrcp.pop %v2490
      %v2555 = vrcp.pop %v2491
      %v2556 = vrcp.pop %v2492
      %v2557 = vrcp.pop %v2493
      %v2558 = vrcp.pop %v2494
      %v2559 = vrcp.pop %v2495
      %v2560 = vrcp.pop %v2496
      %v2561 = vrcp.pop %v2497
      %v2562 = vrcp.pop %v2498
      %v2563 = vrcp.pop %v2499
      %v2564 = vrcp.pop %v2500
      %v2565 = vrcp.pop %v2501
      %v2566 = vrcp.pop %v2502
      %v2567 = vrcp.pop %v2503
      %v2568 = vrcp.pop %v2504
      %v2569 = vrcp.pop %v2505
      %v2570 = vrcp.pop %v2506
      %v2571 = vrcp.pop %v2507
      %v2572 = vrcp.pop %v2508
      %v2573 = vrcp.pop %v2509
      %v2574 = vrcp.pop %v2510
      %v2575 = vrcp.pop %v2511
      %v2576 = vrcp.pop %v2512
      %v2577 = vrcp.pop %v2513
      %v2578 = vrcp.pop %v2514
      %v2579 = vrcp.pop %v2515
      %v2580 = vrcp.pop %v2516
      %v2581 = vrcp.pop %v2517
      %v2582 = vrcp.pop %v2518
      %v2583 = vrcp.pop %v2519
      %v2584 = vrcp.pop %v2520
      %v2585 = vrcp.pop %v2521
      %v2586 = vrcp.pop %v2522
      %v2587 = vrcp.pop %v2523
      %v2588 = vrcp.pop %v2524
      %v2589 = vrcp.pop %v2525
      %v2590 = vrcp.pop %v2526
      %v2591 = vrcp.pop %v2527
      %v2592 = vrcp.pop %v2528
      %v2593 = vrcp.pop %v2529
      %v2594 = vmul.f32 %v2210, %v2530
      %v2595 = vmul.f32 %v2211, %v2531
      %v2596 = vmul.f32 %v2212, %v2532
      %v2597 = vmul.f32 %v2213, %v2533
      %v2598 = vmul.f32 %v2214, %v2534
      %v2599 = vmul.f32 %v2215, %v2535
      %v2600 = vmul.f32 %v2216, %v2536
      %v2601 = vmul.f32 %v2217, %v2537
      %v2602 = vmul.f32 %v2218, %v2538
      %v2603 = vmul.f32 %v2219, %v2539
      %v2604 = vmul.f32 %v2220, %v2540
      %v2605 = vmul.f32 %v2221, %v2541
      %v2606 = vmul.f32 %v2222, %v2542
      %v2607 = vmul.f32 %v2223, %v2543
      %v2608 = vmul.f32 %v2224, %v2544
      %v2609 = vmul.f32 %v2225, %v2545
      %v2610 = vmul.f32 %v2226, %v2546
      %v2611 = vmul.f32 %v2227, %v2547
      %v2612 = vmul.f32 %v2228, %v2548
      %v2613 = vmul.f32 %v2229, %v2549
      %v2614 = vmul.f32 %v2230, %v2550
      %v2615 = vmul.f32 %v2231, %v2551
      %v2616 = vmul.f32 %v2232, %v2552
      %v2617 = vmul.f32 %v2233, %v2553
      %v2618 = vmul.f32 %v2234, %v2554
      %v2619 = vmul.f32 %v2235, %v2555
      %v2620 = vmul.f32 %v2236, %v2556
      %v2621 = vmul.f32 %v2237, %v2557
      %v2622 = vmul.f32 %v2238, %v2558
      %v2623 = vmul.f32 %v2239, %v2559
      %v2624 = vmul.f32 %v2240, %v2560
      %v2625 = vmul.f32 %v2241, %v2561
      %v2626 = vmul.f32 %v2242, %v2562
      %v2627 = vmul.f32 %v2243, %v2563
      %v2628 = vmul.f32 %v2244, %v2564
      %v2629 = vmul.f32 %v2245, %v2565
      %v2630 = vmul.f32 %v2246, %v2566
      %v2631 = vmul.f32 %v2247, %v2567
      %v2632 = vmul.f32 %v2248, %v2568
      %v2633 = vmul.f32 %v2249, %v2569
      %v2634 = vmul.f32 %v2250, %v2570
      %v2635 = vmul.f32 %v2251, %v2571
      %v2636 = vmul.f32 %v2252, %v2572
      %v2637 = vmul.f32 %v2253, %v2573
      %v2638 = vmul.f32 %v2254, %v2574
      %v2639 = vmul.f32 %v2255, %v2575
      %v2640 = vmul.f32 %v2256, %v2576
      %v2641 = vmul.f32 %v2257, %v2577
      %v2642 = vmul.f32 %v2258, %v2578
      %v2643 = vmul.f32 %v2259, %v2579
      %v2644 = vmul.f32 %v2260, %v2580
      %v2645 = vmul.f32 %v2261, %v2581
      %v2646 = vmul.f32 %v2262, %v2582
      %v2647 = vmul.f32 %v2263, %v2583
      %v2648 = vmul.f32 %v2264, %v2584
      %v2649 = vmul.f32 %v2265, %v2585
      %v2650 = vmul.f32 %v2266, %v2586
      %v2651 = vmul.f32 %v2267, %v2587
      %v2652 = vmul.f32 %v2268, %v2588
      %v2653 = vmul.f32 %v2269, %v2589
      %v2654 = vmul.f32 %v2270, %v2590
      %v2655 = vmul.f32 %v2271, %v2591
      %v2656 = vmul.f32 %v2272, %v2592
      %v2657 = vmul.f32 %v2273, %v2593
      %v2658 = vpack.c.bf16 %v2594, %v2594
      %v2659 = vpack.c.bf16 %v2595, %v2595
      %v2660 = vpack.c.bf16 %v2596, %v2596
      %v2661 = vpack.c.bf16 %v2597, %v2597
      %v2662 = vpack.c.bf16 %v2598, %v2598
      %v2663 = vpack.c.bf16 %v2599, %v2599
      %v2664 = vpack.c.bf16 %v2600, %v2600
      %v2665 = vpack.c.bf16 %v2601, %v2601
      %v2666 = vpack.c.bf16 %v2602, %v2602
      %v2667 = vpack.c.bf16 %v2603, %v2603
      %v2668 = vpack.c.bf16 %v2604, %v2604
      %v2669 = vpack.c.bf16 %v2605, %v2605
      %v2670 = vpack.c.bf16 %v2606, %v2606
      %v2671 = vpack.c.bf16 %v2607, %v2607
      %v2672 = vpack.c.bf16 %v2608, %v2608
      %v2673 = vpack.c.bf16 %v2609, %v2609
      %v2674 = vpack.c.bf16 %v2610, %v2610
      %v2675 = vpack.c.bf16 %v2611, %v2611
      %v2676 = vpack.c.bf16 %v2612, %v2612
      %v2677 = vpack.c.bf16 %v2613, %v2613
      %v2678 = vpack.c.bf16 %v2614, %v2614
      %v2679 = vpack.c.bf16 %v2615, %v2615
      %v2680 = vpack.c.bf16 %v2616, %v2616
      %v2681 = vpack.c.bf16 %v2617, %v2617
      %v2682 = vpack.c.bf16 %v2618, %v2618
      %v2683 = vpack.c.bf16 %v2619, %v2619
      %v2684 = vpack.c.bf16 %v2620, %v2620
      %v2685 = vpack.c.bf16 %v2621, %v2621
      %v2686 = vpack.c.bf16 %v2622, %v2622
      %v2687 = vpack.c.bf16 %v2623, %v2623
      %v2688 = vpack.c.bf16 %v2624, %v2624
      %v2689 = vpack.c.bf16 %v2625, %v2625
      %v2690 = vpack.c.bf16 %v2626, %v2626
      %v2691 = vpack.c.bf16 %v2627, %v2627
      %v2692 = vpack.c.bf16 %v2628, %v2628
      %v2693 = vpack.c.bf16 %v2629, %v2629
      %v2694 = vpack.c.bf16 %v2630, %v2630
      %v2695 = vpack.c.bf16 %v2631, %v2631
      %v2696 = vpack.c.bf16 %v2632, %v2632
      %v2697 = vpack.c.bf16 %v2633, %v2633
      %v2698 = vpack.c.bf16 %v2634, %v2634
      %v2699 = vpack.c.bf16 %v2635, %v2635
      %v2700 = vpack.c.bf16 %v2636, %v2636
      %v2701 = vpack.c.bf16 %v2637, %v2637
      %v2702 = vpack.c.bf16 %v2638, %v2638
      %v2703 = vpack.c.bf16 %v2639, %v2639
      %v2704 = vpack.c.bf16 %v2640, %v2640
      %v2705 = vpack.c.bf16 %v2641, %v2641
      %v2706 = vpack.c.bf16 %v2642, %v2642
      %v2707 = vpack.c.bf16 %v2643, %v2643
      %v2708 = vpack.c.bf16 %v2644, %v2644
      %v2709 = vpack.c.bf16 %v2645, %v2645
      %v2710 = vpack.c.bf16 %v2646, %v2646
      %v2711 = vpack.c.bf16 %v2647, %v2647
      %v2712 = vpack.c.bf16 %v2648, %v2648
      %v2713 = vpack.c.bf16 %v2649, %v2649
      %v2714 = vpack.c.bf16 %v2650, %v2650
      %v2715 = vpack.c.bf16 %v2651, %v2651
      %v2716 = vpack.c.bf16 %v2652, %v2652
      %v2717 = vpack.c.bf16 %v2653, %v2653
      %v2718 = vpack.c.bf16 %v2654, %v2654
      %v2719 = vpack.c.bf16 %v2655, %v2655
      %v2720 = vpack.c.bf16 %v2656, %v2656
      %v2721 = vpack.c.bf16 %v2657, %v2657
      %2722 = vst.msk [vmem:[%s370] sm:$0xf] %vm1900, %v2658
      %2723 = vst.msk [vmem:[%s370 + $0x4] sm:$0xf] %vm1900, %v2659
      %2724 = vst.msk [vmem:[%s370 + $0x8] sm:$0xf] %vm1900, %v2660
      %2725 = vst.msk [vmem:[%s370 + $0xc] sm:$0xf] %vm1900, %v2661
      %2726 = vst.msk [vmem:[%s370 + $0x10] sm:$0xf] %vm1900, %v2662
      %2727 = vst.msk [vmem:[%s370 + $0x14] sm:$0xf] %vm1900, %v2663
      %2728 = vst.msk [vmem:[%s370 + $0x18] sm:$0xf] %vm1900, %v2664
      %2729 = vst.msk [vmem:[%s370 + $0x1c] sm:$0xf] %vm1900, %v2665
      %2730 = vst.msk [vmem:[%s370 + $0x20] sm:$0xf] %vm1900, %v2666
      %2731 = vst.msk [vmem:[%s370 + $0x24] sm:$0xf] %vm1900, %v2667
      %2732 = vst.msk [vmem:[%s370 + $0x28] sm:$0xf] %vm1900, %v2668
      %2733 = vst.msk [vmem:[%s370 + $0x2c] sm:$0xf] %vm1900, %v2669
      %2734 = vst.msk [vmem:[%s370 + $0x30] sm:$0xf] %vm1900, %v2670
      %2735 = vst.msk [vmem:[%s370 + $0x34] sm:$0xf] %vm1900, %v2671
      %2736 = vst.msk [vmem:[%s370 + $0x38] sm:$0xf] %vm1900, %v2672
      %2737 = vst.msk [vmem:[%s370 + $0x3c] sm:$0xf] %vm1900, %v2673
      %2738 = vst.msk [vmem:[%s370 + $0x40] sm:$0xf] %vm1900, %v2674
      %2739 = vst.msk [vmem:[%s370 + $0x44] sm:$0xf] %vm1900, %v2675
      %2740 = vst.msk [vmem:[%s370 + $0x48] sm:$0xf] %vm1900, %v2676
      %2741 = vst.msk [vmem:[%s370 + $0x4c] sm:$0xf] %vm1900, %v2677
      %2742 = vst.msk [vmem:[%s370 + $0x50] sm:$0xf] %vm1900, %v2678
      %2743 = vst.msk [vmem:[%s370 + $0x54] sm:$0xf] %vm1900, %v2679
      %2744 = vst.msk [vmem:[%s370 + $0x58] sm:$0xf] %vm1900, %v2680
      %2745 = vst.msk [vmem:[%s370 + $0x5c] sm:$0xf] %vm1900, %v2681
      %2746 = vst.msk [vmem:[%s370 + $0x60] sm:$0xf] %vm1900, %v2682
      %2747 = vst.msk [vmem:[%s370 + $0x64] sm:$0xf] %vm1900, %v2683
      %2748 = vst.msk [vmem:[%s370 + $0x68] sm:$0xf] %vm1900, %v2684
      %2749 = vst.msk [vmem:[%s370 + $0x6c] sm:$0xf] %vm1900, %v2685
      %2750 = vst.msk [vmem:[%s370 + $0x70] sm:$0xf] %vm1900, %v2686
      %2751 = vst.msk [vmem:[%s370 + $0x74] sm:$0xf] %vm1900, %v2687
      %2752 = vst.msk [vmem:[%s370 + $0x78] sm:$0xf] %vm1900, %v2688
      %2753 = vst.msk [vmem:[%s370 + $0x7c] sm:$0xf] %vm1900, %v2689
      %2754 = vst.msk [vmem:[%s370 + $0x80] sm:$0xf] %vm1900, %v2690
      %2755 = vst.msk [vmem:[%s370 + $0x84] sm:$0xf] %vm1900, %v2691
      %2756 = vst.msk [vmem:[%s370 + $0x88] sm:$0xf] %vm1900, %v2692
      %2757 = vst.msk [vmem:[%s370 + $0x8c] sm:$0xf] %vm1900, %v2693
      %2758 = vst.msk [vmem:[%s370 + $0x90] sm:$0xf] %vm1900, %v2694
      %2759 = vst.msk [vmem:[%s370 + $0x94] sm:$0xf] %vm1900, %v2695
      %2760 = vst.msk [vmem:[%s370 + $0x98] sm:$0xf] %vm1900, %v2696
      %2761 = vst.msk [vmem:[%s370 + $0x9c] sm:$0xf] %vm1900, %v2697
      %2762 = vst.msk [vmem:[%s370 + $0xa0] sm:$0xf] %vm1900, %v2698
      %2763 = vst.msk [vmem:[%s370 + $0xa4] sm:$0xf] %vm1900, %v2699
      %2764 = vst.msk [vmem:[%s370 + $0xa8] sm:$0xf] %vm1900, %v2700
      %2765 = vst.msk [vmem:[%s370 + $0xac] sm:$0xf] %vm1900, %v2701
      %2766 = vst.msk [vmem:[%s370 + $0xb0] sm:$0xf] %vm1900, %v2702
      %2767 = vst.msk [vmem:[%s370 + $0xb4] sm:$0xf] %vm1900, %v2703
      %2768 = vst.msk [vmem:[%s370 + $0xb8] sm:$0xf] %vm1900, %v2704
      %2769 = vst.msk [vmem:[%s370 + $0xbc] sm:$0xf] %vm1900, %v2705
      %2770 = vst.msk [vmem:[%s370 + $0xc0] sm:$0xf] %vm1900, %v2706
      %2771 = vst.msk [vmem:[%s370 + $0xc4] sm:$0xf] %vm1900, %v2707
      %2772 = vst.msk [vmem:[%s370 + $0xc8] sm:$0xf] %vm1900, %v2708
      %2773 = vst.msk [vmem:[%s370 + $0xcc] sm:$0xf] %vm1900, %v2709
      %2774 = vst.msk [vmem:[%s370 + $0xd0] sm:$0xf] %vm1900, %v2710
      %2775 = vst.msk [vmem:[%s370 + $0xd4] sm:$0xf] %vm1900, %v2711
      %2776 = vst.msk [vmem:[%s370 + $0xd8] sm:$0xf] %vm1900, %v2712
      %2777 = vst.msk [vmem:[%s370 + $0xdc] sm:$0xf] %vm1900, %v2713
      %2778 = vst.msk [vmem:[%s370 + $0xe0] sm:$0xf] %vm1900, %v2714
      %2779 = vst.msk [vmem:[%s370 + $0xe4] sm:$0xf] %vm1900, %v2715
      %2780 = vst.msk [vmem:[%s370 + $0xe8] sm:$0xf] %vm1900, %v2716
      %2781 = vst.msk [vmem:[%s370 + $0xec] sm:$0xf] %vm1900, %v2717
      %2782 = vst.msk [vmem:[%s370 + $0xf0] sm:$0xf] %vm1900, %v2718
      %2783 = vst.msk [vmem:[%s370 + $0xf4] sm:$0xf] %vm1900, %v2719
      %2784 = vst.msk [vmem:[%s370 + $0xf8] sm:$0xf] %vm1900, %v2720
      %2785 = vst.msk [vmem:[%s370 + $0xfc] sm:$0xf] %vm1900, %v2721
      %s2786 = smul.u32 64, %s21
      %p2787 = scmp.lt.s32.totalorder %s2786, 255
      %s2788 = scalar_select %p2787, %s2786, 255
      %s2789 = smul.addr %s2788, 4
      %s2790 = scalar_lea.vmem %s8, %s2789
      %s2791 = smul.u32 64, %s21
      %p2792 = scmp.lt.s32.totalorder %s2791, 255
      %s2793 = scalar_select %p2792, %s2791, 255
      %s2794 = smul.addr %s2793, 4
      %s2795 = scalar_lea.vmem %s9, %s2794
      // Predicated region
      $region53: #{tpu_custom_call.1} parent=51 // pred_check
        %p2796 = pneg %p217
      $region54: #{tpu_custom_call.1} parent=51 // pred_check_branch
        %2798 = sbr.rel (%p2796) target = $region56
      $region55: #{tpu_custom_call.1} parent=51 // pred_region
        %s2799 = smul.u32 64, %s21
      $region56: #{tpu_custom_call.1} parent=51 // pred_fallthru
        _
      // Predicated region
      $region57: #{tpu_custom_call.1} parent=51 // pred_check
        %p2800 = pneg %p243
      $region58: #{tpu_custom_call.1} parent=51 // pred_check_branch
        %2802 = sbr.rel (%p2800) target = $region60
      $region59: #{tpu_custom_call.1} parent=51 // pred_region
        %s2803 = smul.u32 64, %s21
      $region60: #{tpu_custom_call.1} parent=51 // pred_fallthru
        _
    $region52: #{tpu_custom_call.1} parent=5 // pred_fallthru
      _
    %p2804 = scmp.le.s32.totalorder 2, %s16
    // Predicated region
    $region61: #{tpu_custom_call.1} parent=5 // pred_check
      %p2805 = pneg %p2804
    $region62: #{tpu_custom_call.1} parent=5 // pred_check_branch
      %2807 = sbr.rel (%p2805) target = $region64
    $region63: #{tpu_custom_call.1} parent=5 // pred_region
      %s2808 = ssub.s32 %s16, 2
      // Predicated region
      $region65: #{tpu_custom_call.1} parent=63 // pred_check
        %p2809 = pneg %p223
      $region66: #{tpu_custom_call.1} parent=63 // pred_check_branch
        %2811 = sbr.rel (%p2809) target = $region68
      $region67: #{tpu_custom_call.1} parent=63 // pred_region
        %s2812 = smul.u32 64, %s22
        %p2813 = scmp.lt.s32.totalorder %s2812, 255
        %s2814 = scalar_select %p2813, %s2812, 255
        %s2815 = smul.addr %s2814, 4
        %s2816 = scalar_lea.vmem %s8, %s2815
      $region68: #{tpu_custom_call.1} parent=63 // pred_fallthru
        _
      // Predicated region
      $region69: #{tpu_custom_call.1} parent=63 // pred_check
        %p2817 = pneg %p249
      $region70: #{tpu_custom_call.1} parent=63 // pred_check_branch
        %2819 = sbr.rel (%p2817) target = $region72
      $region71: #{tpu_custom_call.1} parent=63 // pred_region
        %s2820 = smul.u32 64, %s22
        %p2821 = scmp.lt.s32.totalorder %s2820, 255
        %s2822 = scalar_select %p2821, %s2820, 255
        %s2823 = smul.addr %s2822, 4
        %s2824 = scalar_lea.vmem %s9, %s2823
      $region72: #{tpu_custom_call.1} parent=63 // pred_fallthru
        _
    $region64: #{tpu_custom_call.1} parent=5 // pred_fallthru
      _
  $region6: #{tpu_custom_call.1} parent=0 // loop_footer
    %s20 = sadd.s32 1, %s16
  $region7: #{tpu_custom_call.1} parent=0 // loop_footer_branch
    %15 = sbr.rel target = $region3
  $region8: #{tpu_custom_call.1} parent=0 // loop_exit
    _

</llo_original>
